<compile_context>
chip_gen: v7x
topology: tpu7x:2x2x1
jax: 0.10.0
libtpu: 0.0.40
codegen_flags: <defaults>
</compile_context>

<pallas_src>
import jax
import jax.numpy as jnp
from jax.experimental import pallas as pl
from jax.experimental.pallas import tpu as pltpu

LANE = 128
SUBLANE = 8


def _round_up(x, m):
    return (x + m - 1) // m * m


# ----------------------------------------------------------------------------
# Fused 3-layer MLP kernel:  out = relu(relu(x@W1+b1)@W2+b2)@W3+b3
#   x tile   : [TM, F]  bf16
#   weights  : bf16 [in, out] (pre-transposed vs PyTorch), padded to lane multiples
#   biases   : f32  [1, out]
#   out tile : [TM, Cp] f32 (Cp multiple of 128 -> unmasked stores)
# ----------------------------------------------------------------------------
def _proj_mlp_kernel(x_ref, w1_ref, b1_ref, w2_ref, b2_ref, w3_ref, b3_ref, out_ref):
    h1 = jnp.dot(x_ref[...], w1_ref[...], preferred_element_type=jnp.float32) + b1_ref[...]
    h1 = jnp.maximum(h1, 0.0)

    h2 = jnp.dot(h1.astype(w2_ref.dtype), w2_ref[...],
                 preferred_element_type=jnp.float32) + b2_ref[...]
    h2 = jnp.maximum(h2, 0.0)

    y = jnp.dot(h2.astype(w3_ref.dtype), w3_ref[...],
                preferred_element_type=jnp.float32) + b3_ref[...]
    out_ref[...] = y


def panns_proj_forward(embed, prepared):
    """Apply the PANNs projection head to scene embeddings.

    embed    : [B, 2048] float32
    prepared : output of prepare_params() (padded bf16 weights, f32 biases)
    returns  : [B, num_classes] float32 logits.
    """
    B, F = embed.shape
    w1, b1 = prepared["w1"], prepared["b1"]
    w2, b2 = prepared["w2"], prepared["b2"]
    w3, b3 = prepared["w3"], prepared["b3"]
    C = prepared["num_classes"]
    Fp, Hp = w1.shape
    Cp = w3.shape[1]
    assert F == Fp, (F, Fp)

    # Batch tile: >=128 rows when the batch allows (saturate MXU M dim, amortize
    # per-grid-step overhead); otherwise just round tiny batches up to 8 sublanes.
    if B >= 256:
        TM = 256
    elif B >= 128:
        TM = 128
    else:
        TM = _round_up(max(B, 1), SUBLANE)
    Bp = _round_up(B, TM)

    x = embed.astype(jnp.bfloat16)
    if Bp != B:
        x = jnp.pad(x, ((0, Bp - B), (0, 0)))

    weight_bytes = sum(prepared[k].size * prepared[k].dtype.itemsize
                       for k in ("w1", "b1", "w2", "b2", "w3", "b3"))
    cost = pl.CostEstimate(
        flops=2 * Bp * (F * Hp + Hp * Hp + Hp * Cp),
        transcendentals=0,
        bytes_accessed=x.size * x.dtype.itemsize + weight_bytes + Bp * Cp * 4,
    )

    out = pl.pallas_call(
        _proj_mlp_kernel,
        out_shape=jax.ShapeDtypeStruct((Bp, Cp), jnp.float32),
        grid=(Bp // TM,),
        in_specs=[
            pl.BlockSpec((TM, F), lambda i: (i, 0)),    # activations stream over batch
            pl.BlockSpec((F, Hp), lambda i: (0, 0)),    # weights stay VMEM-resident
            pl.BlockSpec((1, Hp), lambda i: (0, 0)),
            pl.BlockSpec((Hp, Hp), lambda i: (0, 0)),
            pl.BlockSpec((1, Hp), lambda i: (0, 0)),
            pl.BlockSpec((Hp, Cp), lambda i: (0, 0)),
            pl.BlockSpec((1, Cp), lambda i: (0, 0)),
        ],
        out_specs=pl.BlockSpec((TM, Cp), lambda i: (i, 0)),
        compiler_params=pltpu.CompilerParams(
            dimension_semantics=("parallel",),          # megacore sharding on v7x
        ),
        cost_estimate=cost,
    )(x, w1, b1, w2, b2, w3, b3)

    return out[:B, :C]


# ----------------------------------------------------------------------------
# Parameter handling
# ----------------------------------------------------------------------------
def init_params(key, in_dim, hidden_dim, num_classes):
    """nn.Linear-style init: U(-1/sqrt(fan_in), +1/sqrt(fan_in)).
    Weights stored transposed relative to PyTorch ([in, out])."""
    keys = jax.random.split(key, 6)

    def linear(kw, kb, fan_in, fan_out):
        bound = 1.0 / jnp.sqrt(fan_in)
        w = jax.random.uniform(kw, (fan_in, fan_out), jnp.float32, -bound, bound)
        b = jax.random.uniform(kb, (1, fan_out), jnp.float32, -bound, bound)
        return w, b

    w1, b1 = linear(keys[0], keys[1], in_dim, hidden_dim)
    w2, b2 = linear(keys[2], keys[3], hidden_dim, hidden_dim)
    w3, b3 = linear(keys[4], keys[5], hidden_dim, num_classes)
    return {"w1": w1, "b1": b1, "w2": w2, "b2": b2, "w3": w3, "b3": b3}


def prepare_params(params):
    """One-time prep: zero-pad feature dims to lane multiples (128) and cast
    weights to bf16 (f32 accumulation in-kernel). Zero padding is exact."""
    F, H = params["w1"].shape
    C = params["w3"].shape[1]
    Hp = _round_up(max(H, LANE), LANE)
    Cp = _round_up(max(C, LANE), LANE)

    def pad2(a, rows, cols, dtype):
        a = jnp.pad(a, ((0, rows - a.shape[0]), (0, cols - a.shape[1])))
        return a.astype(dtype)

    return {
        "w1": pad2(params["w1"], F, Hp, jnp.bfloat16),
        "b1": pad2(params["b1"], 1, Hp, jnp.float32),
        "w2": pad2(params["w2"], Hp, Hp, jnp.bfloat16),
        "b2": pad2(params["b2"], 1, Hp, jnp.float32),
        "w3": pad2(params["w3"], Hp, Cp, jnp.bfloat16),
        "b3": pad2(params["b3"], 1, Cp, jnp.float32),
        "num_classes": C,
    }


def reference_forward(embed, prepared):
    """Pure-JAX reference using the same bf16 weights / f32 accumulation."""
    C = prepared["num_classes"]
    x = embed.astype(jnp.bfloat16)
    h1 = jnp.maximum(
        jnp.dot(x, prepared["w1"], preferred_element_type=jnp.float32) + prepared["b1"], 0.0)
    h2 = jnp.maximum(
        jnp.dot(h1.astype(jnp.bfloat16), prepared["w2"],
                preferred_element_type=jnp.float32) + prepared["b2"], 0.0)
    y = jnp.dot(h2.astype(jnp.bfloat16), prepared["w3"],
                preferred_element_type=jnp.float32) + prepared["b3"]
    return y[:, :C]


if __name__ == "__main__":
    B = 2                # batch
    EMBED_DIM = 2048     # PANNs (CNN14) scene-embedding size, fixed by the backbone
    HIDDEN = 32          # small hidden_dim for the synthetic run (module default: 256)
    NUM_CLASSES = 5

    key = jax.random.PRNGKey(0)
    k_embed, k_params = jax.random.split(key)

    # Synthetic stand-in for panns_get_scene_embeddings(resample(x)) -> [B, 2048].
    embed = jax.random.normal(k_embed, (B, EMBED_DIM), dtype=jnp.float32)

    params = init_params(k_params, EMBED_DIM, HIDDEN, NUM_CLASSES)
    prepared = prepare_params(params)

    out = jax.block_until_ready(panns_proj_forward(embed, prepared))
    ref = reference_forward(embed, prepared)

    assert out.shape == (B, NUM_CLASSES), out.shape
    assert jnp.allclose(out, ref, atol=1e-2, rtol=1e-2), "mismatch vs. pure-JAX reference"

    print("KERNEL_OK")
</pallas_src>

<mosaic_0001>
module attributes {stable_mosaic.version = 11 : i64} {
  func.func @_proj_mlp_kernel(%arg0: i32, %arg1: memref<8x2048xbf16, #tpu.memory_space<vmem>>, %arg2: memref<2048x128xbf16, #tpu.memory_space<vmem>>, %arg3: memref<1x128xf32, #tpu.memory_space<vmem>>, %arg4: memref<128x128xbf16, #tpu.memory_space<vmem>>, %arg5: memref<1x128xf32, #tpu.memory_space<vmem>>, %arg6: memref<128x128xbf16, #tpu.memory_space<vmem>>, %arg7: memref<1x128xf32, #tpu.memory_space<vmem>>, %arg8: memref<8x128xf32, #tpu.memory_space<vmem>>) attributes {dimension_semantics = [#tpu.dimension_semantics<parallel>], iteration_bounds = array<i64: 1>, scalar_prefetch = 0 : i64, scratch_operands = 0 : i64, tpu.core_type = #tpu.core_type<tc>, window_params = [{transform_indices = @transform_0, window_bounds = array<i64: 8, 2048>}, {pipeline_mode = #tpu.pipeline_mode<synchronous>, transform_indices = @transform_1, window_bounds = array<i64: 2048, 128>}, {pipeline_mode = #tpu.pipeline_mode<synchronous>, transform_indices = @transform_2, window_bounds = array<i64: 1, 128>}, {pipeline_mode = #tpu.pipeline_mode<synchronous>, transform_indices = @transform_3, window_bounds = array<i64: 128, 128>}, {pipeline_mode = #tpu.pipeline_mode<synchronous>, transform_indices = @transform_4, window_bounds = array<i64: 1, 128>}, {pipeline_mode = #tpu.pipeline_mode<synchronous>, transform_indices = @transform_5, window_bounds = array<i64: 128, 128>}, {pipeline_mode = #tpu.pipeline_mode<synchronous>, transform_indices = @transform_6, window_bounds = array<i64: 1, 128>}, {transform_indices = @transform_7, window_bounds = array<i64: 8, 128>}]} {
    %c0 = arith.constant 0 : index
    %c0_0 = arith.constant 0 : index
    %0 = vector.load %arg1[%c0, %c0_0] : memref<8x2048xbf16, #tpu.memory_space<vmem>>, vector<8x2048xbf16>
    %c0_1 = arith.constant 0 : index
    %c0_2 = arith.constant 0 : index
    %1 = vector.load %arg2[%c0_1, %c0_2] : memref<2048x128xbf16, #tpu.memory_space<vmem>>, vector<2048x128xbf16>
    %cst = arith.constant dense<0.000000e+00> : vector<8x128xf32>
    %2 = tpu.matmul %0, %1, %cst {dimension_numbers = #tpu.dot_dimension_numbers<[1], [0], [0], [1], [0, 0, 1, 1], [], []>} : vector<8x2048xbf16>, vector<2048x128xbf16>, vector<8x128xf32> -> vector<8x128xf32>
    %c0_3 = arith.constant 0 : index
    %c0_4 = arith.constant 0 : index
    %3 = vector.load %arg3[%c0_3, %c0_4] : memref<1x128xf32, #tpu.memory_space<vmem>>, vector<1x128xf32>
    %4 = vector.broadcast %3 : vector<1x128xf32> to vector<8x128xf32>
    %5 = arith.addf %2, %4 : vector<8x128xf32>
    %cst_5 = arith.constant 0.000000e+00 : f32
    %6 = vector.broadcast %cst_5 : f32 to vector<8x128xf32>
    %7 = arith.maximumf %5, %6 : vector<8x128xf32>
    %8 = arith.truncf %7 : vector<8x128xf32> to vector<8x128xbf16>
    %c0_6 = arith.constant 0 : index
    %c0_7 = arith.constant 0 : index
    %9 = vector.load %arg4[%c0_6, %c0_7] : memref<128x128xbf16, #tpu.memory_space<vmem>>, vector<128x128xbf16>
    %cst_8 = arith.constant dense<0.000000e+00> : vector<8x128xf32>
    %10 = tpu.matmul %8, %9, %cst_8 {dimension_numbers = #tpu.dot_dimension_numbers<[1], [0], [0], [1], [0, 0, 1, 1], [], []>} : vector<8x128xbf16>, vector<128x128xbf16>, vector<8x128xf32> -> vector<8x128xf32>
    %c0_9 = arith.constant 0 : index
    %c0_10 = arith.constant 0 : index
    %11 = vector.load %arg5[%c0_9, %c0_10] : memref<1x128xf32, #tpu.memory_space<vmem>>, vector<1x128xf32>
    %12 = vector.broadcast %11 : vector<1x128xf32> to vector<8x128xf32>
    %13 = arith.addf %10, %12 : vector<8x128xf32>
    %cst_11 = arith.constant 0.000000e+00 : f32
    %14 = vector.broadcast %cst_11 : f32 to vector<8x128xf32>
    %15 = arith.maximumf %13, %14 : vector<8x128xf32>
    %16 = arith.truncf %15 : vector<8x128xf32> to vector<8x128xbf16>
    %c0_12 = arith.constant 0 : index
    %c0_13 = arith.constant 0 : index
    %17 = vector.load %arg6[%c0_12, %c0_13] : memref<128x128xbf16, #tpu.memory_space<vmem>>, vector<128x128xbf16>
    %cst_14 = arith.constant dense<0.000000e+00> : vector<8x128xf32>
    %18 = tpu.matmul %16, %17, %cst_14 {dimension_numbers = #tpu.dot_dimension_numbers<[1], [0], [0], [1], [0, 0, 1, 1], [], []>} : vector<8x128xbf16>, vector<128x128xbf16>, vector<8x128xf32> -> vector<8x128xf32>
    %c0_15 = arith.constant 0 : index
    %c0_16 = arith.constant 0 : index
    %19 = vector.load %arg7[%c0_15, %c0_16] : memref<1x128xf32, #tpu.memory_space<vmem>>, vector<1x128xf32>
    %20 = vector.broadcast %19 : vector<1x128xf32> to vector<8x128xf32>
    %21 = arith.addf %18, %20 : vector<8x128xf32>
    %c0_17 = arith.constant 0 : index
    %c0_18 = arith.constant 0 : index
    %22 = vector.load %arg8[%c0_17, %c0_18] : memref<8x128xf32, #tpu.memory_space<vmem>>, vector<8x128xf32>
    tpu.vector_store %arg8[%c0_17, %c0_18], %21 {strides = array<i32>} : memref<8x128xf32, #tpu.memory_space<vmem>>, vector<8x128xf32>,
    return
  }
  func.func @transform_0(%arg0: i32) -> (i32, i32) {
    %c0_i32 = arith.constant 0 : i32
    %c0_i32_0 = arith.constant 0 : i32
    return %arg0, %c0_i32 : i32, i32
  }
  func.func @transform_1(%arg0: i32) -> (i32, i32) {
    %c0_i32 = arith.constant 0 : i32
    %c0_i32_0 = arith.constant 0 : i32
    %c0_i32_1 = arith.constant 0 : i32
    return %c0_i32, %c0_i32_0 : i32, i32
  }
  func.func @transform_2(%arg0: i32) -> (i32, i32) {
    %c0_i32 = arith.constant 0 : i32
    %c0_i32_0 = arith.constant 0 : i32
    %c0_i32_1 = arith.constant 0 : i32
    return %c0_i32, %c0_i32_0 : i32, i32
  }
  func.func @transform_3(%arg0: i32) -> (i32, i32) {
    %c0_i32 = arith.constant 0 : i32
    %c0_i32_0 = arith.constant 0 : i32
    %c0_i32_1 = arith.constant 0 : i32
    return %c0_i32, %c0_i32_0 : i32, i32
  }
  func.func @transform_4(%arg0: i32) -> (i32, i32) {
    %c0_i32 = arith.constant 0 : i32
    %c0_i32_0 = arith.constant 0 : i32
    %c0_i32_1 = arith.constant 0 : i32
    return %c0_i32, %c0_i32_0 : i32, i32
  }
  func.func @transform_5(%arg0: i32) -> (i32, i32) {
    %c0_i32 = arith.constant 0 : i32
    %c0_i32_0 = arith.constant 0 : i32
    %c0_i32_1 = arith.constant 0 : i32
    return %c0_i32, %c0_i32_0 : i32, i32
  }
  func.func @transform_6(%arg0: i32) -> (i32, i32) {
    %c0_i32 = arith.constant 0 : i32
    %c0_i32_0 = arith.constant 0 : i32
    %c0_i32_1 = arith.constant 0 : i32
    return %c0_i32, %c0_i32_0 : i32, i32
  }
  func.func @transform_7(%arg0: i32) -> (i32, i32) {
    %c0_i32 = arith.constant 0 : i32
    %c0_i32_0 = arith.constant 0 : i32
    return %arg0, %c0_i32 : i32, i32
  }
}

</mosaic_0001>

<llo_original>
// kernel: tpu_custom_call.1
$region0: #{tpu_custom_call.1}
  #allocation0 [shape = 'u32[]', space=smem, size = 0x4, offset = 0x4, fixed_abs, tag = 'smem constant byte address 0x4 - core index']
  #allocation1 [shape = 'u32[144,128]{1,0:T(1,128)}', space=vmem, size = 0x12000, scoped, tag = 'internal scratch']
  %s0 = inlined_call_operand.hbm [shape: bf16[8,2048], index: 0, kind: input, shape index: {}]
  %s1 = inlined_call_operand.hbm [shape: bf16[2048,128], index: 1, kind: input, shape index: {}]
  %s2 = inlined_call_operand.vmem [shape: f32[1,128], index: 2, kind: input, shape index: {}]
  %s3 = inlined_call_operand.hbm [shape: bf16[128,128], index: 3, kind: input, shape index: {}]
  %s4 = inlined_call_operand.vmem [shape: f32[1,128], index: 4, kind: input, shape index: {}]
  %s5 = inlined_call_operand.hbm [shape: bf16[128,128], index: 5, kind: input, shape index: {}]
  %s6 = inlined_call_operand.vmem [shape: f32[1,128], index: 6, kind: input, shape index: {}]
  %s7 = inlined_call_operand.hbm [shape: f32[8,128], index: 7, kind: output, shape index: {}]
  %s8 = sld [smem:[#allocation0]]
  $region54: #{tpu_custom_call.1} parent=0
    _
  %s10 = ssub.s32 1, %s8
  %s11 = scalar_select 0, %s10, %s8
  $region1: #{tpu_custom_call.1} parent=0
    #allocation2 [shape = 'u8[32768]{0}', space=vmem, size = 0x8000, scoped, tag = 'input window, operand 0, single buffered']
    #allocation3 [shape = 's32[1]{0}', space=sflag, size = 0x4, scoped, tag = 'scoped memory for tpu_custom_call.1']
    #allocation4 [shape = 's32[1]{0}', space=sflag, size = 0x4, scoped, tag = 'scoped memory for tpu_custom_call.1']
    #allocation5 [shape = 'u8[524288]{0}', space=vmem, size = 0x80000, scoped, tag = 'input window, operand 1, single buffered']
    #allocation6 [shape = 's32[1]{0}', space=sflag, size = 0x4, scoped, tag = 'scoped memory for tpu_custom_call.1']
    #allocation7 [shape = 'u8[32768]{0}', space=vmem, size = 0x8000, scoped, tag = 'input window, operand 3, single buffered']
    #allocation8 [shape = 'u8[32768]{0}', space=vmem, size = 0x8000, scoped, tag = 'input window, operand 5, single buffered']
    #allocation9 [shape = 's32[1]{0}', space=sflag, size = 0x4, scoped, tag = 'scoped memory for tpu_custom_call.1']
    #allocation10 [shape = 'u8[4096]{0}', space=vmem, size = 0x1000, scoped, tag = 'output window, operand 0, single buffered']
    %12 = vsyncpa [#allocation3], 0
    %13 = vsyncpa [#allocation6], 0
    %14 = vsyncpa [#allocation9], 0
    %15 = vsyncpa [#allocation4], 0
    // Predicated region
    $region2: #{tpu_custom_call.1} parent=1 // pred_check
      _
    $region3: #{tpu_custom_call.1} parent=1 // pred_check_branch
      %17 = sbr.rel (0) target = $region5
    $region4: #{tpu_custom_call.1} parent=1 // pred_region
      %s19 = ssub.s32 1024, 1024
      %20 = vsyncadd [#allocation3], %s19
      %s22 = sshll.u32 [#allocation2], 4
      %s23 = int_to_ptr.vmem [resolvable:$true] %s22
      %25 = dma.hbm_to_vmem [thread:$0]  %s0, 1024, %s23, [#allocation3]
    $region5: #{tpu_custom_call.1} parent=1 // pred_fallthru
      _
    // Predicated region
    $region6: #{tpu_custom_call.1} parent=1 // pred_check
      _
    $region7: #{tpu_custom_call.1} parent=1 // pred_check_branch
      %27 = sbr.rel (0) target = $region9
    $region8: #{tpu_custom_call.1} parent=1 // pred_region
      %s29 = ssub.s32 16384, 16384
      %30 = vsyncadd [#allocation6], %s29
      %s31 = sshll.u32 [#allocation5], 4
      %s32 = int_to_ptr.vmem [resolvable:$true] %s31
      %37 = dma.hbm_to_vmem [thread:$0]  %s1, 16384, %s32, [#allocation6], 64, 64, 4
    $region9: #{tpu_custom_call.1} parent=1 // pred_fallthru
      _
    // Predicated region
    $region10: #{tpu_custom_call.1} parent=1 // pred_check
      _
    $region11: #{tpu_custom_call.1} parent=1 // pred_check_branch
      %39 = sbr.rel (0) target = $region13
    $region12: #{tpu_custom_call.1} parent=1 // pred_region
      _
    $region13: #{tpu_custom_call.1} parent=1 // pred_fallthru
      _
    // Predicated region
    $region14: #{tpu_custom_call.1} parent=1 // pred_check
      _
    $region15: #{tpu_custom_call.1} parent=1 // pred_check_branch
      %41 = sbr.rel (0) target = $region17
    $region16: #{tpu_custom_call.1} parent=1 // pred_region
      %s43 = ssub.s32 1024, 1024
      %44 = vsyncadd [#allocation6], %s43
      %s45 = sshll.u32 [#allocation7], 4
      %s46 = int_to_ptr.vmem [resolvable:$true] %s45
      %51 = dma.hbm_to_vmem [thread:$0]  %s3, 1024, %s46, [#allocation6], 64, 64, 4
    $region17: #{tpu_custom_call.1} parent=1 // pred_fallthru
      _
    // Predicated region
    $region18: #{tpu_custom_call.1} parent=1 // pred_check
      _
    $region19: #{tpu_custom_call.1} parent=1 // pred_check_branch
      %53 = sbr.rel (0) target = $region21
    $region20: #{tpu_custom_call.1} parent=1 // pred_region
      _
    $region21: #{tpu_custom_call.1} parent=1 // pred_fallthru
      _
    // Predicated region
    $region22: #{tpu_custom_call.1} parent=1 // pred_check
      _
    $region23: #{tpu_custom_call.1} parent=1 // pred_check_branch
      %55 = sbr.rel (0) target = $region25
    $region24: #{tpu_custom_call.1} parent=1 // pred_region
      %s57 = ssub.s32 1024, 1024
      %58 = vsyncadd [#allocation9], %s57
      %s59 = sshll.u32 [#allocation8], 4
      %s60 = int_to_ptr.vmem [resolvable:$true] %s59
      %65 = dma.hbm_to_vmem [thread:$0]  %s5, 1024, %s60, [#allocation9], 64, 64, 4
    $region25: #{tpu_custom_call.1} parent=1 // pred_fallthru
      _
    // Predicated region
    $region26: #{tpu_custom_call.1} parent=1 // pred_check
      _
    $region27: #{tpu_custom_call.1} parent=1 // pred_check_branch
      %67 = sbr.rel (0) target = $region29
    $region28: #{tpu_custom_call.1} parent=1 // pred_region
      _
    $region29: #{tpu_custom_call.1} parent=1 // pred_fallthru
      _
    // Predicated region
    $region30: #{tpu_custom_call.1} parent=1 // pred_check
      _
    $region31: #{tpu_custom_call.1} parent=1 // pred_check_branch
      %69 = sbr.rel (0) target = $region33
    $region32: #{tpu_custom_call.1} parent=1 // pred_region
      %70 = dma.done [#allocation3], 1024
    $region33: #{tpu_custom_call.1} parent=1 // pred_fallthru
      _
    // Predicated region
    $region34: #{tpu_custom_call.1} parent=1 // pred_check
      _
    $region35: #{tpu_custom_call.1} parent=1 // pred_check_branch
      %72 = sbr.rel (0) target = $region37
    $region36: #{tpu_custom_call.1} parent=1 // pred_region
      %73 = dma.done [#allocation6], 16384
    $region37: #{tpu_custom_call.1} parent=1 // pred_fallthru
      _
    // Predicated region
    $region38: #{tpu_custom_call.1} parent=1 // pred_check
      _
    $region39: #{tpu_custom_call.1} parent=1 // pred_check_branch
      %75 = sbr.rel (0) target = $region41
    $region40: #{tpu_custom_call.1} parent=1 // pred_region
      %76 = dma.done [#allocation6], 1024
    $region41: #{tpu_custom_call.1} parent=1 // pred_fallthru
      _
    // Predicated region
    $region42: #{tpu_custom_call.1} parent=1 // pred_check
      _
    $region43: #{tpu_custom_call.1} parent=1 // pred_check_branch
      %78 = sbr.rel (0) target = $region45
    $region44: #{tpu_custom_call.1} parent=1 // pred_region
      %79 = dma.done [#allocation9], 1024
    $region45: #{tpu_custom_call.1} parent=1 // pred_fallthru
      _
    %v81 = vld [vmem:[#allocation2] sm:$0xff]
    %v82 = vld [vmem:[#allocation2 + $0x8] sm:$0xff]
    %v83 = vld [vmem:[#allocation2 + $0x10] sm:$0xff]
    %v84 = vld [vmem:[#allocation2 + $0x18] sm:$0xff]
    %v85 = vld [vmem:[#allocation2 + $0x20] sm:$0xff]
    %v86 = vld [vmem:[#allocation2 + $0x28] sm:$0xff]
    %v87 = vld [vmem:[#allocation2 + $0x30] sm:$0xff]
    %v88 = vld [vmem:[#allocation2 + $0x38] sm:$0xff]
    %v89 = vld [vmem:[#allocation5] sm:$0xf]
    %v90 = vld [vmem:[#allocation5 + $0x4] sm:$0xf]
    %v91 = vld [vmem:[#allocation5 + $0x8] sm:$0xf]
    %v92 = vld [vmem:[#allocation5 + $0xc] sm:$0xf]
    %v93 = vld [vmem:[#allocation5 + $0x10] sm:$0xf]
    %v94 = vld [vmem:[#allocation5 + $0x14] sm:$0xf]
    %v95 = vld [vmem:[#allocation5 + $0x18] sm:$0xf]
    %v96 = vld [vmem:[#allocation5 + $0x1c] sm:$0xf]
    %v97 = vld [vmem:[#allocation5 + $0x20] sm:$0xf]
    %v98 = vld [vmem:[#allocation5 + $0x24] sm:$0xf]
    %v99 = vld [vmem:[#allocation5 + $0x28] sm:$0xf]
    %v100 = vld [vmem:[#allocation5 + $0x2c] sm:$0xf]
    %v101 = vld [vmem:[#allocation5 + $0x30] sm:$0xf]
    %v102 = vld [vmem:[#allocation5 + $0x34] sm:$0xf]
    %v103 = vld [vmem:[#allocation5 + $0x38] sm:$0xf]
    %v104 = vld [vmem:[#allocation5 + $0x3c] sm:$0xf]
    %v105 = vld [vmem:[#allocation5 + $0x40] sm:$0xf]
    %v106 = vld [vmem:[#allocation5 + $0x44] sm:$0xf]
    %v107 = vld [vmem:[#allocation5 + $0x48] sm:$0xf]
    %v108 = vld [vmem:[#allocation5 + $0x4c] sm:$0xf]
    %v109 = vld [vmem:[#allocation5 + $0x50] sm:$0xf]
    %v110 = vld [vmem:[#allocation5 + $0x54] sm:$0xf]
    %v111 = vld [vmem:[#allocation5 + $0x58] sm:$0xf]
    %v112 = vld [vmem:[#allocation5 + $0x5c] sm:$0xf]
    %v113 = vld [vmem:[#allocation5 + $0x60] sm:$0xf]
    %v114 = vld [vmem:[#allocation5 + $0x64] sm:$0xf]
    %v115 = vld [vmem:[#allocation5 + $0x68] sm:$0xf]
    %v116 = vld [vmem:[#allocation5 + $0x6c] sm:$0xf]
    %v117 = vld [vmem:[#allocation5 + $0x70] sm:$0xf]
    %v118 = vld [vmem:[#allocation5 + $0x74] sm:$0xf]
    %v119 = vld [vmem:[#allocation5 + $0x78] sm:$0xf]
    %v120 = vld [vmem:[#allocation5 + $0x7c] sm:$0xf]
    %v121 = vld [vmem:[#allocation5 + $0x80] sm:$0xf]
    %v122 = vld [vmem:[#allocation5 + $0x84] sm:$0xf]
    %v123 = vld [vmem:[#allocation5 + $0x88] sm:$0xf]
    %v124 = vld [vmem:[#allocation5 + $0x8c] sm:$0xf]
    %v125 = vld [vmem:[#allocation5 + $0x90] sm:$0xf]
    %v126 = vld [vmem:[#allocation5 + $0x94] sm:$0xf]
    %v127 = vld [vmem:[#allocation5 + $0x98] sm:$0xf]
    %v128 = vld [vmem:[#allocation5 + $0x9c] sm:$0xf]
    %v129 = vld [vmem:[#allocation5 + $0xa0] sm:$0xf]
    %v130 = vld [vmem:[#allocation5 + $0xa4] sm:$0xf]
    %v131 = vld [vmem:[#allocation5 + $0xa8] sm:$0xf]
    %v132 = vld [vmem:[#allocation5 + $0xac] sm:$0xf]
    %v133 = vld [vmem:[#allocation5 + $0xb0] sm:$0xf]
    %v134 = vld [vmem:[#allocation5 + $0xb4] sm:$0xf]
    %v135 = vld [vmem:[#allocation5 + $0xb8] sm:$0xf]
    %v136 = vld [vmem:[#allocation5 + $0xbc] sm:$0xf]
    %v137 = vld [vmem:[#allocation5 + $0xc0] sm:$0xf]
    %v138 = vld [vmem:[#allocation5 + $0xc4] sm:$0xf]
    %v139 = vld [vmem:[#allocation5 + $0xc8] sm:$0xf]
    %v140 = vld [vmem:[#allocation5 + $0xcc] sm:$0xf]
    %v141 = vld [vmem:[#allocation5 + $0xd0] sm:$0xf]
    %v142 = vld [vmem:[#allocation5 + $0xd4] sm:$0xf]
    %v143 = vld [vmem:[#allocation5 + $0xd8] sm:$0xf]
    %v144 = vld [vmem:[#allocation5 + $0xdc] sm:$0xf]
    %v145 = vld [vmem:[#allocation5 + $0xe0] sm:$0xf]
    %v146 = vld [vmem:[#allocation5 + $0xe4] sm:$0xf]
    %v147 = vld [vmem:[#allocation5 + $0xe8] sm:$0xf]
    %v148 = vld [vmem:[#allocation5 + $0xec] sm:$0xf]
    %v149 = vld [vmem:[#allocation5 + $0xf0] sm:$0xf]
    %v150 = vld [vmem:[#allocation5 + $0xf4] sm:$0xf]
    %v151 = vld [vmem:[#allocation5 + $0xf8] sm:$0xf]
    %v152 = vld [vmem:[#allocation5 + $0xfc] sm:$0xf]
    %v153 = vld [vmem:[#allocation5 + $0x100] sm:$0xf]
    %v154 = vld [vmem:[#allocation5 + $0x104] sm:$0xf]
    %v155 = vld [vmem:[#allocation5 + $0x108] sm:$0xf]
    %v156 = vld [vmem:[#allocation5 + $0x10c] sm:$0xf]
    %v157 = vld [vmem:[#allocation5 + $0x110] sm:$0xf]
    %v158 = vld [vmem:[#allocation5 + $0x114] sm:$0xf]
    %v159 = vld [vmem:[#allocation5 + $0x118] sm:$0xf]
    %v160 = vld [vmem:[#allocation5 + $0x11c] sm:$0xf]
    %v161 = vld [vmem:[#allocation5 + $0x120] sm:$0xf]
    %v162 = vld [vmem:[#allocation5 + $0x124] sm:$0xf]
    %v163 = vld [vmem:[#allocation5 + $0x128] sm:$0xf]
    %v164 = vld [vmem:[#allocation5 + $0x12c] sm:$0xf]
    %v165 = vld [vmem:[#allocation5 + $0x130] sm:$0xf]
    %v166 = vld [vmem:[#allocation5 + $0x134] sm:$0xf]
    %v167 = vld [vmem:[#allocation5 + $0x138] sm:$0xf]
    %v168 = vld [vmem:[#allocation5 + $0x13c] sm:$0xf]
    %v169 = vld [vmem:[#allocation5 + $0x140] sm:$0xf]
    %v170 = vld [vmem:[#allocation5 + $0x144] sm:$0xf]
    %v171 = vld [vmem:[#allocation5 + $0x148] sm:$0xf]
    %v172 = vld [vmem:[#allocation5 + $0x14c] sm:$0xf]
    %v173 = vld [vmem:[#allocation5 + $0x150] sm:$0xf]
    %v174 = vld [vmem:[#allocation5 + $0x154] sm:$0xf]
    %v175 = vld [vmem:[#allocation5 + $0x158] sm:$0xf]
    %v176 = vld [vmem:[#allocation5 + $0x15c] sm:$0xf]
    %v177 = vld [vmem:[#allocation5 + $0x160] sm:$0xf]
    %v178 = vld [vmem:[#allocation5 + $0x164] sm:$0xf]
    %v179 = vld [vmem:[#allocation5 + $0x168] sm:$0xf]
    %v180 = vld [vmem:[#allocation5 + $0x16c] sm:$0xf]
    %v181 = vld [vmem:[#allocation5 + $0x170] sm:$0xf]
    %v182 = vld [vmem:[#allocation5 + $0x174] sm:$0xf]
    %v183 = vld [vmem:[#allocation5 + $0x178] sm:$0xf]
    %v184 = vld [vmem:[#allocation5 + $0x17c] sm:$0xf]
    %v185 = vld [vmem:[#allocation5 + $0x180] sm:$0xf]
    %v186 = vld [vmem:[#allocation5 + $0x184] sm:$0xf]
    %v187 = vld [vmem:[#allocation5 + $0x188] sm:$0xf]
    %v188 = vld [vmem:[#allocation5 + $0x18c] sm:$0xf]
    %v189 = vld [vmem:[#allocation5 + $0x190] sm:$0xf]
    %v190 = vld [vmem:[#allocation5 + $0x194] sm:$0xf]
    %v191 = vld [vmem:[#allocation5 + $0x198] sm:$0xf]
    %v192 = vld [vmem:[#allocation5 + $0x19c] sm:$0xf]
    %v193 = vld [vmem:[#allocation5 + $0x1a0] sm:$0xf]
    %v194 = vld [vmem:[#allocation5 + $0x1a4] sm:$0xf]
    %v195 = vld [vmem:[#allocation5 + $0x1a8] sm:$0xf]
    %v196 = vld [vmem:[#allocation5 + $0x1ac] sm:$0xf]
    %v197 = vld [vmem:[#allocation5 + $0x1b0] sm:$0xf]
    %v198 = vld [vmem:[#allocation5 + $0x1b4] sm:$0xf]
    %v199 = vld [vmem:[#allocation5 + $0x1b8] sm:$0xf]
    %v200 = vld [vmem:[#allocation5 + $0x1bc] sm:$0xf]
    %v201 = vld [vmem:[#allocation5 + $0x1c0] sm:$0xf]
    %v202 = vld [vmem:[#allocation5 + $0x1c4] sm:$0xf]
    %v203 = vld [vmem:[#allocation5 + $0x1c8] sm:$0xf]
    %v204 = vld [vmem:[#allocation5 + $0x1cc] sm:$0xf]
    %v205 = vld [vmem:[#allocation5 + $0x1d0] sm:$0xf]
    %v206 = vld [vmem:[#allocation5 + $0x1d4] sm:$0xf]
    %v207 = vld [vmem:[#allocation5 + $0x1d8] sm:$0xf]
    %v208 = vld [vmem:[#allocation5 + $0x1dc] sm:$0xf]
    %v209 = vld [vmem:[#allocation5 + $0x1e0] sm:$0xf]
    %v210 = vld [vmem:[#allocation5 + $0x1e4] sm:$0xf]
    %v211 = vld [vmem:[#allocation5 + $0x1e8] sm:$0xf]
    %v212 = vld [vmem:[#allocation5 + $0x1ec] sm:$0xf]
    %v213 = vld [vmem:[#allocation5 + $0x1f0] sm:$0xf]
    %v214 = vld [vmem:[#allocation5 + $0x1f4] sm:$0xf]
    %v215 = vld [vmem:[#allocation5 + $0x1f8] sm:$0xf]
    %v216 = vld [vmem:[#allocation5 + $0x1fc] sm:$0xf]
    %v217 = vld [vmem:[#allocation5 + $0x200] sm:$0xf]
    %v218 = vld [vmem:[#allocation5 + $0x204] sm:$0xf]
    %v219 = vld [vmem:[#allocation5 + $0x208] sm:$0xf]
    %v220 = vld [vmem:[#allocation5 + $0x20c] sm:$0xf]
    %v221 = vld [vmem:[#allocation5 + $0x210] sm:$0xf]
    %v222 = vld [vmem:[#allocation5 + $0x214] sm:$0xf]
    %v223 = vld [vmem:[#allocation5 + $0x218] sm:$0xf]
    %v224 = vld [vmem:[#allocation5 + $0x21c] sm:$0xf]
    %v225 = vld [vmem:[#allocation5 + $0x220] sm:$0xf]
    %v226 = vld [vmem:[#allocation5 + $0x224] sm:$0xf]
    %v227 = vld [vmem:[#allocation5 + $0x228] sm:$0xf]
    %v228 = vld [vmem:[#allocation5 + $0x22c] sm:$0xf]
    %v229 = vld [vmem:[#allocation5 + $0x230] sm:$0xf]
    %v230 = vld [vmem:[#allocation5 + $0x234] sm:$0xf]
    %v231 = vld [vmem:[#allocation5 + $0x238] sm:$0xf]
    %v232 = vld [vmem:[#allocation5 + $0x23c] sm:$0xf]
    %v233 = vld [vmem:[#allocation5 + $0x240] sm:$0xf]
    %v234 = vld [vmem:[#allocation5 + $0x244] sm:$0xf]
    %v235 = vld [vmem:[#allocation5 + $0x248] sm:$0xf]
    %v236 = vld [vmem:[#allocation5 + $0x24c] sm:$0xf]
    %v237 = vld [vmem:[#allocation5 + $0x250] sm:$0xf]
    %v238 = vld [vmem:[#allocation5 + $0x254] sm:$0xf]
    %v239 = vld [vmem:[#allocation5 + $0x258] sm:$0xf]
    %v240 = vld [vmem:[#allocation5 + $0x25c] sm:$0xf]
    %v241 = vld [vmem:[#allocation5 + $0x260] sm:$0xf]
    %v242 = vld [vmem:[#allocation5 + $0x264] sm:$0xf]
    %v243 = vld [vmem:[#allocation5 + $0x268] sm:$0xf]
    %v244 = vld [vmem:[#allocation5 + $0x26c] sm:$0xf]
    %v245 = vld [vmem:[#allocation5 + $0x270] sm:$0xf]
    %v246 = vld [vmem:[#allocation5 + $0x274] sm:$0xf]
    %v247 = vld [vmem:[#allocation5 + $0x278] sm:$0xf]
    %v248 = vld [vmem:[#allocation5 + $0x27c] sm:$0xf]
    %v249 = vld [vmem:[#allocation5 + $0x280] sm:$0xf]
    %v250 = vld [vmem:[#allocation5 + $0x284] sm:$0xf]
    %v251 = vld [vmem:[#allocation5 + $0x288] sm:$0xf]
    %v252 = vld [vmem:[#allocation5 + $0x28c] sm:$0xf]
    %v253 = vld [vmem:[#allocation5 + $0x290] sm:$0xf]
    %v254 = vld [vmem:[#allocation5 + $0x294] sm:$0xf]
    %v255 = vld [vmem:[#allocation5 + $0x298] sm:$0xf]
    %v256 = vld [vmem:[#allocation5 + $0x29c] sm:$0xf]
    %v257 = vld [vmem:[#allocation5 + $0x2a0] sm:$0xf]
    %v258 = vld [vmem:[#allocation5 + $0x2a4] sm:$0xf]
    %v259 = vld [vmem:[#allocation5 + $0x2a8] sm:$0xf]
    %v260 = vld [vmem:[#allocation5 + $0x2ac] sm:$0xf]
    %v261 = vld [vmem:[#allocation5 + $0x2b0] sm:$0xf]
    %v262 = vld [vmem:[#allocation5 + $0x2b4] sm:$0xf]
    %v263 = vld [vmem:[#allocation5 + $0x2b8] sm:$0xf]
    %v264 = vld [vmem:[#allocation5 + $0x2bc] sm:$0xf]
    %v265 = vld [vmem:[#allocation5 + $0x2c0] sm:$0xf]
    %v266 = vld [vmem:[#allocation5 + $0x2c4] sm:$0xf]
    %v267 = vld [vmem:[#allocation5 + $0x2c8] sm:$0xf]
    %v268 = vld [vmem:[#allocation5 + $0x2cc] sm:$0xf]
    %v269 = vld [vmem:[#allocation5 + $0x2d0] sm:$0xf]
    %v270 = vld [vmem:[#allocation5 + $0x2d4] sm:$0xf]
    %v271 = vld [vmem:[#allocation5 + $0x2d8] sm:$0xf]
    %v272 = vld [vmem:[#allocation5 + $0x2dc] sm:$0xf]
    %v273 = vld [vmem:[#allocation5 + $0x2e0] sm:$0xf]
    %v274 = vld [vmem:[#allocation5 + $0x2e4] sm:$0xf]
    %v275 = vld [vmem:[#allocation5 + $0x2e8] sm:$0xf]
    %v276 = vld [vmem:[#allocation5 + $0x2ec] sm:$0xf]
    %v277 = vld [vmem:[#allocation5 + $0x2f0] sm:$0xf]
    %v278 = vld [vmem:[#allocation5 + $0x2f4] sm:$0xf]
    %v279 = vld [vmem:[#allocation5 + $0x2f8] sm:$0xf]
    %v280 = vld [vmem:[#allocation5 + $0x2fc] sm:$0xf]
    %v281 = vld [vmem:[#allocation5 + $0x300] sm:$0xf]
    %v282 = vld [vmem:[#allocation5 + $0x304] sm:$0xf]
    %v283 = vld [vmem:[#allocation5 + $0x308] sm:$0xf]
    %v284 = vld [vmem:[#allocation5 + $0x30c] sm:$0xf]
    %v285 = vld [vmem:[#allocation5 + $0x310] sm:$0xf]
    %v286 = vld [vmem:[#allocation5 + $0x314] sm:$0xf]
    %v287 = vld [vmem:[#allocation5 + $0x318] sm:$0xf]
    %v288 = vld [vmem:[#allocation5 + $0x31c] sm:$0xf]
    %v289 = vld [vmem:[#allocation5 + $0x320] sm:$0xf]
    %v290 = vld [vmem:[#allocation5 + $0x324] sm:$0xf]
    %v291 = vld [vmem:[#allocation5 + $0x328] sm:$0xf]
    %v292 = vld [vmem:[#allocation5 + $0x32c] sm:$0xf]
    %v293 = vld [vmem:[#allocation5 + $0x330] sm:$0xf]
    %v294 = vld [vmem:[#allocation5 + $0x334] sm:$0xf]
    %v295 = vld [vmem:[#allocation5 + $0x338] sm:$0xf]
    %v296 = vld [vmem:[#allocation5 + $0x33c] sm:$0xf]
    %v297 = vld [vmem:[#allocation5 + $0x340] sm:$0xf]
    %v298 = vld [vmem:[#allocation5 + $0x344] sm:$0xf]
    %v299 = vld [vmem:[#allocation5 + $0x348] sm:$0xf]
    %v300 = vld [vmem:[#allocation5 + $0x34c] sm:$0xf]
    %v301 = vld [vmem:[#allocation5 + $0x350] sm:$0xf]
    %v302 = vld [vmem:[#allocation5 + $0x354] sm:$0xf]
    %v303 = vld [vmem:[#allocation5 + $0x358] sm:$0xf]
    %v304 = vld [vmem:[#allocation5 + $0x35c] sm:$0xf]
    %v305 = vld [vmem:[#allocation5 + $0x360] sm:$0xf]
    %v306 = vld [vmem:[#allocation5 + $0x364] sm:$0xf]
    %v307 = vld [vmem:[#allocation5 + $0x368] sm:$0xf]
    %v308 = vld [vmem:[#allocation5 + $0x36c] sm:$0xf]
    %v309 = vld [vmem:[#allocation5 + $0x370] sm:$0xf]
    %v310 = vld [vmem:[#allocation5 + $0x374] sm:$0xf]
    %v311 = vld [vmem:[#allocation5 + $0x378] sm:$0xf]
    %v312 = vld [vmem:[#allocation5 + $0x37c] sm:$0xf]
    %v313 = vld [vmem:[#allocation5 + $0x380] sm:$0xf]
    %v314 = vld [vmem:[#allocation5 + $0x384] sm:$0xf]
    %v315 = vld [vmem:[#allocation5 + $0x388] sm:$0xf]
    %v316 = vld [vmem:[#allocation5 + $0x38c] sm:$0xf]
    %v317 = vld [vmem:[#allocation5 + $0x390] sm:$0xf]
    %v318 = vld [vmem:[#allocation5 + $0x394] sm:$0xf]
    %v319 = vld [vmem:[#allocation5 + $0x398] sm:$0xf]
    %v320 = vld [vmem:[#allocation5 + $0x39c] sm:$0xf]
    %v321 = vld [vmem:[#allocation5 + $0x3a0] sm:$0xf]
    %v322 = vld [vmem:[#allocation5 + $0x3a4] sm:$0xf]
    %v323 = vld [vmem:[#allocation5 + $0x3a8] sm:$0xf]
    %v324 = vld [vmem:[#allocation5 + $0x3ac] sm:$0xf]
    %v325 = vld [vmem:[#allocation5 + $0x3b0] sm:$0xf]
    %v326 = vld [vmem:[#allocation5 + $0x3b4] sm:$0xf]
    %v327 = vld [vmem:[#allocation5 + $0x3b8] sm:$0xf]
    %v328 = vld [vmem:[#allocation5 + $0x3bc] sm:$0xf]
    %v329 = vld [vmem:[#allocation5 + $0x3c0] sm:$0xf]
    %v330 = vld [vmem:[#allocation5 + $0x3c4] sm:$0xf]
    %v331 = vld [vmem:[#allocation5 + $0x3c8] sm:$0xf]
    %v332 = vld [vmem:[#allocation5 + $0x3cc] sm:$0xf]
    %v333 = vld [vmem:[#allocation5 + $0x3d0] sm:$0xf]
    %v334 = vld [vmem:[#allocation5 + $0x3d4] sm:$0xf]
    %v335 = vld [vmem:[#allocation5 + $0x3d8] sm:$0xf]
    %v336 = vld [vmem:[#allocation5 + $0x3dc] sm:$0xf]
    %v337 = vld [vmem:[#allocation5 + $0x3e0] sm:$0xf]
    %v338 = vld [vmem:[#allocation5 + $0x3e4] sm:$0xf]
    %v339 = vld [vmem:[#allocation5 + $0x3e8] sm:$0xf]
    %v340 = vld [vmem:[#allocation5 + $0x3ec] sm:$0xf]
    %v341 = vld [vmem:[#allocation5 + $0x3f0] sm:$0xf]
    %v342 = vld [vmem:[#allocation5 + $0x3f4] sm:$0xf]
    %v343 = vld [vmem:[#allocation5 + $0x3f8] sm:$0xf]
    %v344 = vld [vmem:[#allocation5 + $0x3fc] sm:$0xf]
    %v345 = vld [vmem:[%s2] sm:$0x1]
    %v347 = vlaneseq
    %v348 = vshrl.u32 %v347, 7
    %v349 = vsub.s32 0, %v348
    %v350 = vrot.slane %v345, %v349
    %v360 = vunpack.c.l.b16 %v81
    %v361 = vunpack.c.h.b16 %v81
    %v362 = vunpack.c.l.b16 %v82
    %v363 = vunpack.c.h.b16 %v82
    %v364 = vunpack.c.l.b16 %v83
    %v365 = vunpack.c.h.b16 %v83
    %v366 = vunpack.c.l.b16 %v84
    %v367 = vunpack.c.h.b16 %v84
    %v368 = vunpack.c.l.b16 %v85
    %v369 = vunpack.c.h.b16 %v85
    %v370 = vunpack.c.l.b16 %v86
    %v371 = vunpack.c.h.b16 %v86
    %v372 = vunpack.c.l.b16 %v87
    %v373 = vunpack.c.h.b16 %v87
    %v374 = vunpack.c.l.b16 %v88
    %v375 = vunpack.c.h.b16 %v88
    %v376 = vpack.c.b16 %v360, %v360
    %v377 = vpack.c.b16 %v361, %v361
    %v378 = vpack.c.b16 %v362, %v362
    %v379 = vpack.c.b16 %v363, %v363
    %v380 = vpack.c.b16 %v364, %v364
    %v381 = vpack.c.b16 %v365, %v365
    %v382 = vpack.c.b16 %v366, %v366
    %v383 = vpack.c.b16 %v367, %v367
    %v384 = vpack.c.b16 %v368, %v368
    %v385 = vpack.c.b16 %v369, %v369
    %v386 = vpack.c.b16 %v370, %v370
    %v387 = vpack.c.b16 %v371, %v371
    %v388 = vpack.c.b16 %v372, %v372
    %v389 = vpack.c.b16 %v373, %v373
    %v390 = vpack.c.b16 %v374, %v374
    %v391 = vpack.c.b16 %v375, %v375
    %v664 = vunpack.c.l.b16 %v89
    %v665 = vunpack.c.l.b16 %v90
    %v666 = vunpack.c.l.b16 %v91
    %v667 = vunpack.c.l.b16 %v92
    %v668 = vunpack.c.l.b16 %v93
    %v669 = vunpack.c.l.b16 %v94
    %v670 = vunpack.c.l.b16 %v95
    %v671 = vunpack.c.l.b16 %v96
    %v672 = vunpack.c.l.b16 %v97
    %v673 = vunpack.c.l.b16 %v98
    %v674 = vunpack.c.l.b16 %v99
    %v675 = vunpack.c.l.b16 %v100
    %v676 = vunpack.c.l.b16 %v101
    %v677 = vunpack.c.l.b16 %v102
    %v678 = vunpack.c.l.b16 %v103
    %v679 = vunpack.c.l.b16 %v104
    %v680 = vunpack.c.l.b16 %v105
    %v681 = vunpack.c.l.b16 %v106
    %v682 = vunpack.c.l.b16 %v107
    %v683 = vunpack.c.l.b16 %v108
    %v684 = vunpack.c.l.b16 %v109
    %v685 = vunpack.c.l.b16 %v110
    %v686 = vunpack.c.l.b16 %v111
    %v687 = vunpack.c.l.b16 %v112
    %v688 = vunpack.c.l.b16 %v113
    %v689 = vunpack.c.l.b16 %v114
    %v690 = vunpack.c.l.b16 %v115
    %v691 = vunpack.c.l.b16 %v116
    %v692 = vunpack.c.l.b16 %v117
    %v693 = vunpack.c.l.b16 %v118
    %v694 = vunpack.c.l.b16 %v119
    %v695 = vunpack.c.l.b16 %v120
    %v696 = vunpack.c.l.b16 %v121
    %v697 = vunpack.c.l.b16 %v122
    %v698 = vunpack.c.l.b16 %v123
    %v699 = vunpack.c.l.b16 %v124
    %v700 = vunpack.c.l.b16 %v125
    %v701 = vunpack.c.l.b16 %v126
    %v702 = vunpack.c.l.b16 %v127
    %v703 = vunpack.c.l.b16 %v128
    %v704 = vunpack.c.l.b16 %v129
    %v705 = vunpack.c.l.b16 %v130
    %v706 = vunpack.c.l.b16 %v131
    %v707 = vunpack.c.l.b16 %v132
    %v708 = vunpack.c.l.b16 %v133
    %v709 = vunpack.c.l.b16 %v134
    %v710 = vunpack.c.l.b16 %v135
    %v711 = vunpack.c.l.b16 %v136
    %v712 = vunpack.c.l.b16 %v137
    %v713 = vunpack.c.l.b16 %v138
    %v714 = vunpack.c.l.b16 %v139
    %v715 = vunpack.c.l.b16 %v140
    %v716 = vunpack.c.l.b16 %v141
    %v717 = vunpack.c.l.b16 %v142
    %v718 = vunpack.c.l.b16 %v143
    %v719 = vunpack.c.l.b16 %v144
    %v720 = vunpack.c.l.b16 %v145
    %v721 = vunpack.c.l.b16 %v146
    %v722 = vunpack.c.l.b16 %v147
    %v723 = vunpack.c.l.b16 %v148
    %v724 = vunpack.c.l.b16 %v149
    %v725 = vunpack.c.l.b16 %v150
    %v726 = vunpack.c.l.b16 %v151
    %v727 = vunpack.c.l.b16 %v152
    %v728 = vunpack.c.l.b16 %v153
    %v729 = vunpack.c.l.b16 %v154
    %v730 = vunpack.c.l.b16 %v155
    %v731 = vunpack.c.l.b16 %v156
    %v732 = vunpack.c.l.b16 %v157
    %v733 = vunpack.c.l.b16 %v158
    %v734 = vunpack.c.l.b16 %v159
    %v735 = vunpack.c.l.b16 %v160
    %v736 = vunpack.c.l.b16 %v161
    %v737 = vunpack.c.l.b16 %v162
    %v738 = vunpack.c.l.b16 %v163
    %v739 = vunpack.c.l.b16 %v164
    %v740 = vunpack.c.l.b16 %v165
    %v741 = vunpack.c.l.b16 %v166
    %v742 = vunpack.c.l.b16 %v167
    %v743 = vunpack.c.l.b16 %v168
    %v744 = vunpack.c.l.b16 %v169
    %v745 = vunpack.c.l.b16 %v170
    %v746 = vunpack.c.l.b16 %v171
    %v747 = vunpack.c.l.b16 %v172
    %v748 = vunpack.c.l.b16 %v173
    %v749 = vunpack.c.l.b16 %v174
    %v750 = vunpack.c.l.b16 %v175
    %v751 = vunpack.c.l.b16 %v176
    %v752 = vunpack.c.l.b16 %v177
    %v753 = vunpack.c.l.b16 %v178
    %v754 = vunpack.c.l.b16 %v179
    %v755 = vunpack.c.l.b16 %v180
    %v756 = vunpack.c.l.b16 %v181
    %v757 = vunpack.c.l.b16 %v182
    %v758 = vunpack.c.l.b16 %v183
    %v759 = vunpack.c.l.b16 %v184
    %v760 = vunpack.c.l.b16 %v185
    %v761 = vunpack.c.l.b16 %v186
    %v762 = vunpack.c.l.b16 %v187
    %v763 = vunpack.c.l.b16 %v188
    %v764 = vunpack.c.l.b16 %v189
    %v765 = vunpack.c.l.b16 %v190
    %v766 = vunpack.c.l.b16 %v191
    %v767 = vunpack.c.l.b16 %v192
    %v768 = vunpack.c.l.b16 %v193
    %v769 = vunpack.c.l.b16 %v194
    %v770 = vunpack.c.l.b16 %v195
    %v771 = vunpack.c.l.b16 %v196
    %v772 = vunpack.c.l.b16 %v197
    %v773 = vunpack.c.l.b16 %v198
    %v774 = vunpack.c.l.b16 %v199
    %v775 = vunpack.c.l.b16 %v200
    %v776 = vunpack.c.l.b16 %v201
    %v777 = vunpack.c.l.b16 %v202
    %v778 = vunpack.c.l.b16 %v203
    %v779 = vunpack.c.l.b16 %v204
    %v780 = vunpack.c.l.b16 %v205
    %v781 = vunpack.c.l.b16 %v206
    %v782 = vunpack.c.l.b16 %v207
    %v783 = vunpack.c.l.b16 %v208
    %v784 = vunpack.c.l.b16 %v209
    %v785 = vunpack.c.l.b16 %v210
    %v786 = vunpack.c.l.b16 %v211
    %v787 = vunpack.c.l.b16 %v212
    %v788 = vunpack.c.l.b16 %v213
    %v789 = vunpack.c.l.b16 %v214
    %v790 = vunpack.c.l.b16 %v215
    %v791 = vunpack.c.l.b16 %v216
    %v792 = vunpack.c.l.b16 %v217
    %v793 = vunpack.c.l.b16 %v218
    %v794 = vunpack.c.l.b16 %v219
    %v795 = vunpack.c.l.b16 %v220
    %v796 = vunpack.c.l.b16 %v221
    %v797 = vunpack.c.l.b16 %v222
    %v798 = vunpack.c.l.b16 %v223
    %v799 = vunpack.c.l.b16 %v224
    %v800 = vunpack.c.l.b16 %v225
    %v801 = vunpack.c.l.b16 %v226
    %v802 = vunpack.c.l.b16 %v227
    %v803 = vunpack.c.l.b16 %v228
    %v804 = vunpack.c.l.b16 %v229
    %v805 = vunpack.c.l.b16 %v230
    %v806 = vunpack.c.l.b16 %v231
    %v807 = vunpack.c.l.b16 %v232
    %v808 = vunpack.c.l.b16 %v233
    %v809 = vunpack.c.l.b16 %v234
    %v810 = vunpack.c.l.b16 %v235
    %v811 = vunpack.c.l.b16 %v236
    %v812 = vunpack.c.l.b16 %v237
    %v813 = vunpack.c.l.b16 %v238
    %v814 = vunpack.c.l.b16 %v239
    %v815 = vunpack.c.l.b16 %v240
    %v816 = vunpack.c.l.b16 %v241
    %v817 = vunpack.c.l.b16 %v242
    %v818 = vunpack.c.l.b16 %v243
    %v819 = vunpack.c.l.b16 %v244
    %v820 = vunpack.c.l.b16 %v245
    %v821 = vunpack.c.l.b16 %v246
    %v822 = vunpack.c.l.b16 %v247
    %v823 = vunpack.c.l.b16 %v248
    %v824 = vunpack.c.l.b16 %v249
    %v825 = vunpack.c.l.b16 %v250
    %v826 = vunpack.c.l.b16 %v251
    %v827 = vunpack.c.l.b16 %v252
    %v828 = vunpack.c.l.b16 %v253
    %v829 = vunpack.c.l.b16 %v254
    %v830 = vunpack.c.l.b16 %v255
    %v831 = vunpack.c.l.b16 %v256
    %v832 = vunpack.c.l.b16 %v257
    %v833 = vunpack.c.l.b16 %v258
    %v834 = vunpack.c.l.b16 %v259
    %v835 = vunpack.c.l.b16 %v260
    %v836 = vunpack.c.l.b16 %v261
    %v837 = vunpack.c.l.b16 %v262
    %v838 = vunpack.c.l.b16 %v263
    %v839 = vunpack.c.l.b16 %v264
    %v840 = vunpack.c.l.b16 %v265
    %v841 = vunpack.c.l.b16 %v266
    %v842 = vunpack.c.l.b16 %v267
    %v843 = vunpack.c.l.b16 %v268
    %v844 = vunpack.c.l.b16 %v269
    %v845 = vunpack.c.l.b16 %v270
    %v846 = vunpack.c.l.b16 %v271
    %v847 = vunpack.c.l.b16 %v272
    %v848 = vunpack.c.l.b16 %v273
    %v849 = vunpack.c.l.b16 %v274
    %v850 = vunpack.c.l.b16 %v275
    %v851 = vunpack.c.l.b16 %v276
    %v852 = vunpack.c.l.b16 %v277
    %v853 = vunpack.c.l.b16 %v278
    %v854 = vunpack.c.l.b16 %v279
    %v855 = vunpack.c.l.b16 %v280
    %v856 = vunpack.c.l.b16 %v281
    %v857 = vunpack.c.l.b16 %v282
    %v858 = vunpack.c.l.b16 %v283
    %v859 = vunpack.c.l.b16 %v284
    %v860 = vunpack.c.l.b16 %v285
    %v861 = vunpack.c.l.b16 %v286
    %v862 = vunpack.c.l.b16 %v287
    %v863 = vunpack.c.l.b16 %v288
    %v864 = vunpack.c.l.b16 %v289
    %v865 = vunpack.c.l.b16 %v290
    %v866 = vunpack.c.l.b16 %v291
    %v867 = vunpack.c.l.b16 %v292
    %v868 = vunpack.c.l.b16 %v293
    %v869 = vunpack.c.l.b16 %v294
    %v870 = vunpack.c.l.b16 %v295
    %v871 = vunpack.c.l.b16 %v296
    %v872 = vunpack.c.l.b16 %v297
    %v873 = vunpack.c.l.b16 %v298
    %v874 = vunpack.c.l.b16 %v299
    %v875 = vunpack.c.l.b16 %v300
    %v876 = vunpack.c.l.b16 %v301
    %v877 = vunpack.c.l.b16 %v302
    %v878 = vunpack.c.l.b16 %v303
    %v879 = vunpack.c.l.b16 %v304
    %v880 = vunpack.c.l.b16 %v305
    %v881 = vunpack.c.l.b16 %v306
    %v882 = vunpack.c.l.b16 %v307
    %v883 = vunpack.c.l.b16 %v308
    %v884 = vunpack.c.l.b16 %v309
    %v885 = vunpack.c.l.b16 %v310
    %v886 = vunpack.c.l.b16 %v311
    %v887 = vunpack.c.l.b16 %v312
    %v888 = vunpack.c.l.b16 %v313
    %v889 = vunpack.c.l.b16 %v314
    %v890 = vunpack.c.l.b16 %v315
    %v891 = vunpack.c.l.b16 %v316
    %v892 = vunpack.c.l.b16 %v317
    %v893 = vunpack.c.l.b16 %v318
    %v894 = vunpack.c.l.b16 %v319
    %v895 = vunpack.c.l.b16 %v320
    %v896 = vunpack.c.l.b16 %v321
    %v897 = vunpack.c.l.b16 %v322
    %v898 = vunpack.c.l.b16 %v323
    %v899 = vunpack.c.l.b16 %v324
    %v900 = vunpack.c.l.b16 %v325
    %v901 = vunpack.c.l.b16 %v326
    %v902 = vunpack.c.l.b16 %v327
    %v903 = vunpack.c.l.b16 %v328
    %v904 = vunpack.c.l.b16 %v329
    %v905 = vunpack.c.l.b16 %v330
    %v906 = vunpack.c.l.b16 %v331
    %v907 = vunpack.c.l.b16 %v332
    %v908 = vunpack.c.l.b16 %v333
    %v909 = vunpack.c.l.b16 %v334
    %v910 = vunpack.c.l.b16 %v335
    %v911 = vunpack.c.l.b16 %v336
    %v912 = vunpack.c.l.b16 %v337
    %v913 = vunpack.c.l.b16 %v338
    %v914 = vunpack.c.l.b16 %v339
    %v915 = vunpack.c.l.b16 %v340
    %v916 = vunpack.c.l.b16 %v341
    %v917 = vunpack.c.l.b16 %v342
    %v918 = vunpack.c.l.b16 %v343
    %v919 = vunpack.c.l.b16 %v344
    %v920 = vpack.c.b16 %v665, %v664
    %v921 = vpack.c.b16 %v667, %v666
    %v922 = vpack.c.b16 %v669, %v668
    %v923 = vpack.c.b16 %v671, %v670
    %v924 = vpack.c.b16 %v673, %v672
    %v925 = vpack.c.b16 %v675, %v674
    %v926 = vpack.c.b16 %v677, %v676
    %v927 = vpack.c.b16 %v679, %v678
    %v928 = vpack.c.b16 %v681, %v680
    %v929 = vpack.c.b16 %v683, %v682
    %v930 = vpack.c.b16 %v685, %v684
    %v931 = vpack.c.b16 %v687, %v686
    %v932 = vpack.c.b16 %v689, %v688
    %v933 = vpack.c.b16 %v691, %v690
    %v934 = vpack.c.b16 %v693, %v692
    %v935 = vpack.c.b16 %v695, %v694
    %v936 = vpack.c.b16 %v697, %v696
    %v937 = vpack.c.b16 %v699, %v698
    %v938 = vpack.c.b16 %v701, %v700
    %v939 = vpack.c.b16 %v703, %v702
    %v940 = vpack.c.b16 %v705, %v704
    %v941 = vpack.c.b16 %v707, %v706
    %v942 = vpack.c.b16 %v709, %v708
    %v943 = vpack.c.b16 %v711, %v710
    %v944 = vpack.c.b16 %v713, %v712
    %v945 = vpack.c.b16 %v715, %v714
    %v946 = vpack.c.b16 %v717, %v716
    %v947 = vpack.c.b16 %v719, %v718
    %v948 = vpack.c.b16 %v721, %v720
    %v949 = vpack.c.b16 %v723, %v722
    %v950 = vpack.c.b16 %v725, %v724
    %v951 = vpack.c.b16 %v727, %v726
    %v952 = vpack.c.b16 %v729, %v728
    %v953 = vpack.c.b16 %v731, %v730
    %v954 = vpack.c.b16 %v733, %v732
    %v955 = vpack.c.b16 %v735, %v734
    %v956 = vpack.c.b16 %v737, %v736
    %v957 = vpack.c.b16 %v739, %v738
    %v958 = vpack.c.b16 %v741, %v740
    %v959 = vpack.c.b16 %v743, %v742
    %v960 = vpack.c.b16 %v745, %v744
    %v961 = vpack.c.b16 %v747, %v746
    %v962 = vpack.c.b16 %v749, %v748
    %v963 = vpack.c.b16 %v751, %v750
    %v964 = vpack.c.b16 %v753, %v752
    %v965 = vpack.c.b16 %v755, %v754
    %v966 = vpack.c.b16 %v757, %v756
    %v967 = vpack.c.b16 %v759, %v758
    %v968 = vpack.c.b16 %v761, %v760
    %v969 = vpack.c.b16 %v763, %v762
    %v970 = vpack.c.b16 %v765, %v764
    %v971 = vpack.c.b16 %v767, %v766
    %v972 = vpack.c.b16 %v769, %v768
    %v973 = vpack.c.b16 %v771, %v770
    %v974 = vpack.c.b16 %v773, %v772
    %v975 = vpack.c.b16 %v775, %v774
    %v976 = vpack.c.b16 %v777, %v776
    %v977 = vpack.c.b16 %v779, %v778
    %v978 = vpack.c.b16 %v781, %v780
    %v979 = vpack.c.b16 %v783, %v782
    %v980 = vpack.c.b16 %v785, %v784
    %v981 = vpack.c.b16 %v787, %v786
    %v982 = vpack.c.b16 %v789, %v788
    %v983 = vpack.c.b16 %v791, %v790
    %v984 = vpack.c.b16 %v793, %v792
    %v985 = vpack.c.b16 %v795, %v794
    %v986 = vpack.c.b16 %v797, %v796
    %v987 = vpack.c.b16 %v799, %v798
    %v988 = vpack.c.b16 %v801, %v800
    %v989 = vpack.c.b16 %v803, %v802
    %v990 = vpack.c.b16 %v805, %v804
    %v991 = vpack.c.b16 %v807, %v806
    %v992 = vpack.c.b16 %v809, %v808
    %v993 = vpack.c.b16 %v811, %v810
    %v994 = vpack.c.b16 %v813, %v812
    %v995 = vpack.c.b16 %v815, %v814
    %v996 = vpack.c.b16 %v817, %v816
    %v997 = vpack.c.b16 %v819, %v818
    %v998 = vpack.c.b16 %v821, %v820
    %v999 = vpack.c.b16 %v823, %v822
    %v1000 = vpack.c.b16 %v825, %v824
    %v1001 = vpack.c.b16 %v827, %v826
    %v1002 = vpack.c.b16 %v829, %v828
    %v1003 = vpack.c.b16 %v831, %v830
    %v1004 = vpack.c.b16 %v833, %v832
    %v1005 = vpack.c.b16 %v835, %v834
    %v1006 = vpack.c.b16 %v837, %v836
    %v1007 = vpack.c.b16 %v839, %v838
    %v1008 = vpack.c.b16 %v841, %v840
    %v1009 = vpack.c.b16 %v843, %v842
    %v1010 = vpack.c.b16 %v845, %v844
    %v1011 = vpack.c.b16 %v847, %v846
    %v1012 = vpack.c.b16 %v849, %v848
    %v1013 = vpack.c.b16 %v851, %v850
    %v1014 = vpack.c.b16 %v853, %v852
    %v1015 = vpack.c.b16 %v855, %v854
    %v1016 = vpack.c.b16 %v857, %v856
    %v1017 = vpack.c.b16 %v859, %v858
    %v1018 = vpack.c.b16 %v861, %v860
    %v1019 = vpack.c.b16 %v863, %v862
    %v1020 = vpack.c.b16 %v865, %v864
    %v1021 = vpack.c.b16 %v867, %v866
    %v1022 = vpack.c.b16 %v869, %v868
    %v1023 = vpack.c.b16 %v871, %v870
    %v1024 = vpack.c.b16 %v873, %v872
    %v1025 = vpack.c.b16 %v875, %v874
    %v1026 = vpack.c.b16 %v877, %v876
    %v1027 = vpack.c.b16 %v879, %v878
    %v1028 = vpack.c.b16 %v881, %v880
    %v1029 = vpack.c.b16 %v883, %v882
    %v1030 = vpack.c.b16 %v885, %v884
    %v1031 = vpack.c.b16 %v887, %v886
    %v1032 = vpack.c.b16 %v889, %v888
    %v1033 = vpack.c.b16 %v891, %v890
    %v1034 = vpack.c.b16 %v893, %v892
    %v1035 = vpack.c.b16 %v895, %v894
    %v1036 = vpack.c.b16 %v897, %v896
    %v1037 = vpack.c.b16 %v899, %v898
    %v1038 = vpack.c.b16 %v901, %v900
    %v1039 = vpack.c.b16 %v903, %v902
    %v1040 = vpack.c.b16 %v905, %v904
    %v1041 = vpack.c.b16 %v907, %v906
    %v1042 = vpack.c.b16 %v909, %v908
    %v1043 = vpack.c.b16 %v911, %v910
    %v1044 = vpack.c.b16 %v913, %v912
    %v1045 = vpack.c.b16 %v915, %v914
    %v1046 = vpack.c.b16 %v917, %v916
    %v1047 = vpack.c.b16 %v919, %v918
    %1176 = vmatprep.subr.bf16.mxu0 0
    %1177 = vmatpush1.bf16.msra.mxu0 %v920
    %1178 = vmatprep.subr.bf16.mxu0 0
    %1179 = vmatpush1.bf16.msra.mxu0 %v921
    %1180 = vmatprep.subr.bf16.mxu0 0
    %1181 = vmatpush1.bf16.msra.mxu0 %v922
    %1182 = vmatprep.subr.bf16.mxu0 0
    %1183 = vmatpush1.bf16.msra.mxu0 %v923
    %1184 = vmatprep.subr.bf16.mxu0 0
    %1185 = vmatpush1.bf16.msra.mxu0 %v924
    %1186 = vmatprep.subr.bf16.mxu0 0
    %1187 = vmatpush1.bf16.msra.mxu0 %v925
    %1188 = vmatprep.subr.bf16.mxu0 0
    %1189 = vmatpush1.bf16.msra.mxu0 %v926
    %1190 = vmatprep.subr.bf16.mxu0 0
    %1191 = vmatpush1.bf16.msra.mxu0 %v927
    %1192 = vmatprep.subr.bf16.mxu0 0
    %1193 = vmatpush1.bf16.msra.mxu0 %v928
    %1194 = vmatprep.subr.bf16.mxu0 0
    %1195 = vmatpush1.bf16.msra.mxu0 %v929
    %1196 = vmatprep.subr.bf16.mxu0 0
    %1197 = vmatpush1.bf16.msra.mxu0 %v930
    %1198 = vmatprep.subr.bf16.mxu0 0
    %1199 = vmatpush1.bf16.msra.mxu0 %v931
    %1200 = vmatprep.subr.bf16.mxu0 0
    %1201 = vmatpush1.bf16.msra.mxu0 %v932
    %1202 = vmatprep.subr.bf16.mxu0 0
    %1203 = vmatpush1.bf16.msra.mxu0 %v933
    %1204 = vmatprep.subr.bf16.mxu0 0
    %1205 = vmatpush1.bf16.msra.mxu0 %v934
    %1206 = vmatprep.subr.bf16.mxu0 0
    %1207 = vmatpush1.bf16.msra.mxu0 %v935
    %1208 = vmatprep.mubr.bf16.mxu0 %v377
    %1209 = vmatmul.mubr.bf16.gmra.mrb[0].mxu0 %v376
    %v1210 = vpop.f32.mrb[0].mxu0
    %v1211 = vadd.f32 %v350, %v1210
    %v1212 = vpop.f32.mrb[0].mxu0
    %v1213 = vpop.f32.mrb[0].mxu0
    %v1214 = vpop.f32.mrb[0].mxu0
    %1215 = vdwg.mxu0
    %1216 = vmatprep.subr.bf16.mxu0 0
    %1217 = vmatpush1.bf16.msra.mxu0 %v936
    %1218 = vmatprep.subr.bf16.mxu0 0
    %1219 = vmatpush1.bf16.msra.mxu0 %v937
    %1220 = vmatprep.subr.bf16.mxu0 0
    %1221 = vmatpush1.bf16.msra.mxu0 %v938
    %1222 = vmatprep.subr.bf16.mxu0 0
    %1223 = vmatpush1.bf16.msra.mxu0 %v939
    %1224 = vmatprep.subr.bf16.mxu0 0
    %1225 = vmatpush1.bf16.msra.mxu0 %v940
    %1226 = vmatprep.subr.bf16.mxu0 0
    %1227 = vmatpush1.bf16.msra.mxu0 %v941
    %1228 = vmatprep.subr.bf16.mxu0 0
    %1229 = vmatpush1.bf16.msra.mxu0 %v942
    %1230 = vmatprep.subr.bf16.mxu0 0
    %1231 = vmatpush1.bf16.msra.mxu0 %v943
    %1232 = vmatprep.subr.bf16.mxu0 0
    %1233 = vmatpush1.bf16.msra.mxu0 %v944
    %1234 = vmatprep.subr.bf16.mxu0 0
    %1235 = vmatpush1.bf16.msra.mxu0 %v945
    %1236 = vmatprep.subr.bf16.mxu0 0
    %1237 = vmatpush1.bf16.msra.mxu0 %v946
    %1238 = vmatprep.subr.bf16.mxu0 0
    %1239 = vmatpush1.bf16.msra.mxu0 %v947
    %1240 = vmatprep.subr.bf16.mxu0 0
    %1241 = vmatpush1.bf16.msra.mxu0 %v948
    %1242 = vmatprep.subr.bf16.mxu0 0
    %1243 = vmatpush1.bf16.msra.mxu0 %v949
    %1244 = vmatprep.subr.bf16.mxu0 0
    %1245 = vmatpush1.bf16.msra.mxu0 %v950
    %1246 = vmatprep.subr.bf16.mxu0 0
    %1247 = vmatpush1.bf16.msra.mxu0 %v951
    %1248 = vmatprep.mubr.bf16.mxu0 %v379
    %1249 = vmatmul.mubr.bf16.gmra.mrb[0].mxu0 %v378
    %v1250 = vpop.f32.mrb[0].mxu0
    %v1251 = vadd.f32 %v1211, %v1250
    %v1252 = vpop.f32.mrb[0].mxu0
    %v1253 = vpop.f32.mrb[0].mxu0
    %v1254 = vpop.f32.mrb[0].mxu0
    %1255 = vdwg.mxu0
    %1256 = vmatprep.subr.bf16.mxu0 0
    %1257 = vmatpush1.bf16.msra.mxu0 %v952
    %1258 = vmatprep.subr.bf16.mxu0 0
    %1259 = vmatpush1.bf16.msra.mxu0 %v953
    %1260 = vmatprep.subr.bf16.mxu0 0
    %1261 = vmatpush1.bf16.msra.mxu0 %v954
    %1262 = vmatprep.subr.bf16.mxu0 0
    %1263 = vmatpush1.bf16.msra.mxu0 %v955
    %1264 = vmatprep.subr.bf16.mxu0 0
    %1265 = vmatpush1.bf16.msra.mxu0 %v956
    %1266 = vmatprep.subr.bf16.mxu0 0
    %1267 = vmatpush1.bf16.msra.mxu0 %v957
    %1268 = vmatprep.subr.bf16.mxu0 0
    %1269 = vmatpush1.bf16.msra.mxu0 %v958
    %1270 = vmatprep.subr.bf16.mxu0 0
    %1271 = vmatpush1.bf16.msra.mxu0 %v959
    %1272 = vmatprep.subr.bf16.mxu0 0
    %1273 = vmatpush1.bf16.msra.mxu0 %v960
    %1274 = vmatprep.subr.bf16.mxu0 0
    %1275 = vmatpush1.bf16.msra.mxu0 %v961
    %1276 = vmatprep.subr.bf16.mxu0 0
    %1277 = vmatpush1.bf16.msra.mxu0 %v962
    %1278 = vmatprep.subr.bf16.mxu0 0
    %1279 = vmatpush1.bf16.msra.mxu0 %v963
    %1280 = vmatprep.subr.bf16.mxu0 0
    %1281 = vmatpush1.bf16.msra.mxu0 %v964
    %1282 = vmatprep.subr.bf16.mxu0 0
    %1283 = vmatpush1.bf16.msra.mxu0 %v965
    %1284 = vmatprep.subr.bf16.mxu0 0
    %1285 = vmatpush1.bf16.msra.mxu0 %v966
    %1286 = vmatprep.subr.bf16.mxu0 0
    %1287 = vmatpush1.bf16.msra.mxu0 %v967
    %1288 = vmatprep.mubr.bf16.mxu0 %v381
    %1289 = vmatmul.mubr.bf16.gmra.mrb[0].mxu0 %v380
    %v1290 = vpop.f32.mrb[0].mxu0
    %v1291 = vadd.f32 %v1251, %v1290
    %v1292 = vpop.f32.mrb[0].mxu0
    %v1293 = vpop.f32.mrb[0].mxu0
    %v1294 = vpop.f32.mrb[0].mxu0
    %1295 = vdwg.mxu0
    %1296 = vmatprep.subr.bf16.mxu0 0
    %1297 = vmatpush1.bf16.msra.mxu0 %v968
    %1298 = vmatprep.subr.bf16.mxu0 0
    %1299 = vmatpush1.bf16.msra.mxu0 %v969
    %1300 = vmatprep.subr.bf16.mxu0 0
    %1301 = vmatpush1.bf16.msra.mxu0 %v970
    %1302 = vmatprep.subr.bf16.mxu0 0
    %1303 = vmatpush1.bf16.msra.mxu0 %v971
    %1304 = vmatprep.subr.bf16.mxu0 0
    %1305 = vmatpush1.bf16.msra.mxu0 %v972
    %1306 = vmatprep.subr.bf16.mxu0 0
    %1307 = vmatpush1.bf16.msra.mxu0 %v973
    %1308 = vmatprep.subr.bf16.mxu0 0
    %1309 = vmatpush1.bf16.msra.mxu0 %v974
    %1310 = vmatprep.subr.bf16.mxu0 0
    %1311 = vmatpush1.bf16.msra.mxu0 %v975
    %1312 = vmatprep.subr.bf16.mxu0 0
    %1313 = vmatpush1.bf16.msra.mxu0 %v976
    %1314 = vmatprep.subr.bf16.mxu0 0
    %1315 = vmatpush1.bf16.msra.mxu0 %v977
    %1316 = vmatprep.subr.bf16.mxu0 0
    %1317 = vmatpush1.bf16.msra.mxu0 %v978
    %1318 = vmatprep.subr.bf16.mxu0 0
    %1319 = vmatpush1.bf16.msra.mxu0 %v979
    %1320 = vmatprep.subr.bf16.mxu0 0
    %1321 = vmatpush1.bf16.msra.mxu0 %v980
    %1322 = vmatprep.subr.bf16.mxu0 0
    %1323 = vmatpush1.bf16.msra.mxu0 %v981
    %1324 = vmatprep.subr.bf16.mxu0 0
    %1325 = vmatpush1.bf16.msra.mxu0 %v982
    %1326 = vmatprep.subr.bf16.mxu0 0
    %1327 = vmatpush1.bf16.msra.mxu0 %v983
    %1328 = vmatprep.mubr.bf16.mxu0 %v383
    %1329 = vmatmul.mubr.bf16.gmra.mrb[0].mxu0 %v382
    %v1330 = vpop.f32.mrb[0].mxu0
    %v1331 = vadd.f32 %v1291, %v1330
    %v1332 = vpop.f32.mrb[0].mxu0
    %v1333 = vpop.f32.mrb[0].mxu0
    %v1334 = vpop.f32.mrb[0].mxu0
    %1335 = vdwg.mxu0
    %1336 = vmatprep.subr.bf16.mxu0 0
    %1337 = vmatpush1.bf16.msra.mxu0 %v984
    %1338 = vmatprep.subr.bf16.mxu0 0
    %1339 = vmatpush1.bf16.msra.mxu0 %v985
    %1340 = vmatprep.subr.bf16.mxu0 0
    %1341 = vmatpush1.bf16.msra.mxu0 %v986
    %1342 = vmatprep.subr.bf16.mxu0 0
    %1343 = vmatpush1.bf16.msra.mxu0 %v987
    %1344 = vmatprep.subr.bf16.mxu0 0
    %1345 = vmatpush1.bf16.msra.mxu0 %v988
    %1346 = vmatprep.subr.bf16.mxu0 0
    %1347 = vmatpush1.bf16.msra.mxu0 %v989
    %1348 = vmatprep.subr.bf16.mxu0 0
    %1349 = vmatpush1.bf16.msra.mxu0 %v990
    %1350 = vmatprep.subr.bf16.mxu0 0
    %1351 = vmatpush1.bf16.msra.mxu0 %v991
    %1352 = vmatprep.subr.bf16.mxu0 0
    %1353 = vmatpush1.bf16.msra.mxu0 %v992
    %1354 = vmatprep.subr.bf16.mxu0 0
    %1355 = vmatpush1.bf16.msra.mxu0 %v993
    %1356 = vmatprep.subr.bf16.mxu0 0
    %1357 = vmatpush1.bf16.msra.mxu0 %v994
    %1358 = vmatprep.subr.bf16.mxu0 0
    %1359 = vmatpush1.bf16.msra.mxu0 %v995
    %1360 = vmatprep.subr.bf16.mxu0 0
    %1361 = vmatpush1.bf16.msra.mxu0 %v996
    %1362 = vmatprep.subr.bf16.mxu0 0
    %1363 = vmatpush1.bf16.msra.mxu0 %v997
    %1364 = vmatprep.subr.bf16.mxu0 0
    %1365 = vmatpush1.bf16.msra.mxu0 %v998
    %1366 = vmatprep.subr.bf16.mxu0 0
    %1367 = vmatpush1.bf16.msra.mxu0 %v999
    %1368 = vmatprep.mubr.bf16.mxu0 %v385
    %1369 = vmatmul.mubr.bf16.gmra.mrb[0].mxu0 %v384
    %v1370 = vpop.f32.mrb[0].mxu0
    %v1371 = vadd.f32 %v1331, %v1370
    %v1372 = vpop.f32.mrb[0].mxu0
    %v1373 = vpop.f32.mrb[0].mxu0
    %v1374 = vpop.f32.mrb[0].mxu0
    %1375 = vdwg.mxu0
    %1376 = vmatprep.subr.bf16.mxu0 0
    %1377 = vmatpush1.bf16.msra.mxu0 %v1000
    %1378 = vmatprep.subr.bf16.mxu0 0
    %1379 = vmatpush1.bf16.msra.mxu0 %v1001
    %1380 = vmatprep.subr.bf16.mxu0 0
    %1381 = vmatpush1.bf16.msra.mxu0 %v1002
    %1382 = vmatprep.subr.bf16.mxu0 0
    %1383 = vmatpush1.bf16.msra.mxu0 %v1003
    %1384 = vmatprep.subr.bf16.mxu0 0
    %1385 = vmatpush1.bf16.msra.mxu0 %v1004
    %1386 = vmatprep.subr.bf16.mxu0 0
    %1387 = vmatpush1.bf16.msra.mxu0 %v1005
    %1388 = vmatprep.subr.bf16.mxu0 0
    %1389 = vmatpush1.bf16.msra.mxu0 %v1006
    %1390 = vmatprep.subr.bf16.mxu0 0
    %1391 = vmatpush1.bf16.msra.mxu0 %v1007
    %1392 = vmatprep.subr.bf16.mxu0 0
    %1393 = vmatpush1.bf16.msra.mxu0 %v1008
    %1394 = vmatprep.subr.bf16.mxu0 0
    %1395 = vmatpush1.bf16.msra.mxu0 %v1009
    %1396 = vmatprep.subr.bf16.mxu0 0
    %1397 = vmatpush1.bf16.msra.mxu0 %v1010
    %1398 = vmatprep.subr.bf16.mxu0 0
    %1399 = vmatpush1.bf16.msra.mxu0 %v1011
    %1400 = vmatprep.subr.bf16.mxu0 0
    %1401 = vmatpush1.bf16.msra.mxu0 %v1012
    %1402 = vmatprep.subr.bf16.mxu0 0
    %1403 = vmatpush1.bf16.msra.mxu0 %v1013
    %1404 = vmatprep.subr.bf16.mxu0 0
    %1405 = vmatpush1.bf16.msra.mxu0 %v1014
    %1406 = vmatprep.subr.bf16.mxu0 0
    %1407 = vmatpush1.bf16.msra.mxu0 %v1015
    %1408 = vmatprep.mubr.bf16.mxu0 %v387
    %1409 = vmatmul.mubr.bf16.gmra.mrb[0].mxu0 %v386
    %v1410 = vpop.f32.mrb[0].mxu0
    %v1411 = vadd.f32 %v1371, %v1410
    %v1412 = vpop.f32.mrb[0].mxu0
    %v1413 = vpop.f32.mrb[0].mxu0
    %v1414 = vpop.f32.mrb[0].mxu0
    %1415 = vdwg.mxu0
    %1416 = vmatprep.subr.bf16.mxu0 0
    %1417 = vmatpush1.bf16.msra.mxu0 %v1016
    %1418 = vmatprep.subr.bf16.mxu0 0
    %1419 = vmatpush1.bf16.msra.mxu0 %v1017
    %1420 = vmatprep.subr.bf16.mxu0 0
    %1421 = vmatpush1.bf16.msra.mxu0 %v1018
    %1422 = vmatprep.subr.bf16.mxu0 0
    %1423 = vmatpush1.bf16.msra.mxu0 %v1019
    %1424 = vmatprep.subr.bf16.mxu0 0
    %1425 = vmatpush1.bf16.msra.mxu0 %v1020
    %1426 = vmatprep.subr.bf16.mxu0 0
    %1427 = vmatpush1.bf16.msra.mxu0 %v1021
    %1428 = vmatprep.subr.bf16.mxu0 0
    %1429 = vmatpush1.bf16.msra.mxu0 %v1022
    %1430 = vmatprep.subr.bf16.mxu0 0
    %1431 = vmatpush1.bf16.msra.mxu0 %v1023
    %1432 = vmatprep.subr.bf16.mxu0 0
    %1433 = vmatpush1.bf16.msra.mxu0 %v1024
    %1434 = vmatprep.subr.bf16.mxu0 0
    %1435 = vmatpush1.bf16.msra.mxu0 %v1025
    %1436 = vmatprep.subr.bf16.mxu0 0
    %1437 = vmatpush1.bf16.msra.mxu0 %v1026
    %1438 = vmatprep.subr.bf16.mxu0 0
    %1439 = vmatpush1.bf16.msra.mxu0 %v1027
    %1440 = vmatprep.subr.bf16.mxu0 0
    %1441 = vmatpush1.bf16.msra.mxu0 %v1028
    %1442 = vmatprep.subr.bf16.mxu0 0
    %1443 = vmatpush1.bf16.msra.mxu0 %v1029
    %1444 = vmatprep.subr.bf16.mxu0 0
    %1445 = vmatpush1.bf16.msra.mxu0 %v1030
    %1446 = vmatprep.subr.bf16.mxu0 0
    %1447 = vmatpush1.bf16.msra.mxu0 %v1031
    %1448 = vmatprep.mubr.bf16.mxu0 %v389
    %1449 = vmatmul.mubr.bf16.gmra.mrb[0].mxu0 %v388
    %v1450 = vpop.f32.mrb[0].mxu0
    %v1451 = vadd.f32 %v1411, %v1450
    %v1452 = vpop.f32.mrb[0].mxu0
    %v1453 = vpop.f32.mrb[0].mxu0
    %v1454 = vpop.f32.mrb[0].mxu0
    %1455 = vdwg.mxu0
    %1456 = vmatprep.subr.bf16.mxu0 0
    %1457 = vmatpush1.bf16.msra.mxu0 %v1032
    %1458 = vmatprep.subr.bf16.mxu0 0
    %1459 = vmatpush1.bf16.msra.mxu0 %v1033
    %1460 = vmatprep.subr.bf16.mxu0 0
    %1461 = vmatpush1.bf16.msra.mxu0 %v1034
    %1462 = vmatprep.subr.bf16.mxu0 0
    %1463 = vmatpush1.bf16.msra.mxu0 %v1035
    %1464 = vmatprep.subr.bf16.mxu0 0
    %1465 = vmatpush1.bf16.msra.mxu0 %v1036
    %1466 = vmatprep.subr.bf16.mxu0 0
    %1467 = vmatpush1.bf16.msra.mxu0 %v1037
    %1468 = vmatprep.subr.bf16.mxu0 0
    %1469 = vmatpush1.bf16.msra.mxu0 %v1038
    %1470 = vmatprep.subr.bf16.mxu0 0
    %1471 = vmatpush1.bf16.msra.mxu0 %v1039
    %1472 = vmatprep.subr.bf16.mxu0 0
    %1473 = vmatpush1.bf16.msra.mxu0 %v1040
    %1474 = vmatprep.subr.bf16.mxu0 0
    %1475 = vmatpush1.bf16.msra.mxu0 %v1041
    %1476 = vmatprep.subr.bf16.mxu0 0
    %1477 = vmatpush1.bf16.msra.mxu0 %v1042
    %1478 = vmatprep.subr.bf16.mxu0 0
    %1479 = vmatpush1.bf16.msra.mxu0 %v1043
    %1480 = vmatprep.subr.bf16.mxu0 0
    %1481 = vmatpush1.bf16.msra.mxu0 %v1044
    %1482 = vmatprep.subr.bf16.mxu0 0
    %1483 = vmatpush1.bf16.msra.mxu0 %v1045
    %1484 = vmatprep.subr.bf16.mxu0 0
    %1485 = vmatpush1.bf16.msra.mxu0 %v1046
    %1486 = vmatprep.subr.bf16.mxu0 0
    %1487 = vmatpush1.bf16.msra.mxu0 %v1047
    %1488 = vmatprep.mubr.bf16.mxu0 %v391
    %1489 = vmatmul.mubr.bf16.gmra.mrb[0].mxu0 %v390
    %v1490 = vpop.f32.mrb[0].mxu0
    %v1491 = vadd.f32 %v1451, %v1490
    %v1492 = vpop.f32.mrb[0].mxu0
    %v1493 = vpop.f32.mrb[0].mxu0
    %v1494 = vpop.f32.mrb[0].mxu0
    %1495 = vdwg.mxu0
    %v1496 = vmax.f32 %v1491, 0.0
    %v1497 = vpack.c.bf16 %v1496, %v1496
    %v1498 = vld [vmem:[#allocation7] sm:$0xf]
    %v1499 = vld [vmem:[#allocation7 + $0x4] sm:$0xf]
    %v1500 = vld [vmem:[#allocation7 + $0x8] sm:$0xf]
    %v1501 = vld [vmem:[#allocation7 + $0xc] sm:$0xf]
    %v1502 = vld [vmem:[#allocation7 + $0x10] sm:$0xf]
    %v1503 = vld [vmem:[#allocation7 + $0x14] sm:$0xf]
    %v1504 = vld [vmem:[#allocation7 + $0x18] sm:$0xf]
    %v1505 = vld [vmem:[#allocation7 + $0x1c] sm:$0xf]
    %v1506 = vld [vmem:[#allocation7 + $0x20] sm:$0xf]
    %v1507 = vld [vmem:[#allocation7 + $0x24] sm:$0xf]
    %v1508 = vld [vmem:[#allocation7 + $0x28] sm:$0xf]
    %v1509 = vld [vmem:[#allocation7 + $0x2c] sm:$0xf]
    %v1510 = vld [vmem:[#allocation7 + $0x30] sm:$0xf]
    %v1511 = vld [vmem:[#allocation7 + $0x34] sm:$0xf]
    %v1512 = vld [vmem:[#allocation7 + $0x38] sm:$0xf]
    %v1513 = vld [vmem:[#allocation7 + $0x3c] sm:$0xf]
    %v1514 = vld [vmem:[%s4] sm:$0x1]
    %v1516 = vlaneseq
    %v1517 = vshrl.u32 %v1516, 7
    %v1518 = vsub.s32 0, %v1517
    %v1519 = vrot.slane %v1514, %v1518
    %v1537 = vunpack.c.l.b16 %v1498
    %v1538 = vunpack.c.l.b16 %v1499
    %v1539 = vunpack.c.l.b16 %v1500
    %v1540 = vunpack.c.l.b16 %v1501
    %v1541 = vunpack.c.l.b16 %v1502
    %v1542 = vunpack.c.l.b16 %v1503
    %v1543 = vunpack.c.l.b16 %v1504
    %v1544 = vunpack.c.l.b16 %v1505
    %v1545 = vunpack.c.l.b16 %v1506
    %v1546 = vunpack.c.l.b16 %v1507
    %v1547 = vunpack.c.l.b16 %v1508
    %v1548 = vunpack.c.l.b16 %v1509
    %v1549 = vunpack.c.l.b16 %v1510
    %v1550 = vunpack.c.l.b16 %v1511
    %v1551 = vunpack.c.l.b16 %v1512
    %v1552 = vunpack.c.l.b16 %v1513
    %v1553 = vpack.c.b16 %v1538, %v1537
    %v1554 = vpack.c.b16 %v1540, %v1539
    %v1555 = vpack.c.b16 %v1542, %v1541
    %v1556 = vpack.c.b16 %v1544, %v1543
    %v1557 = vpack.c.b16 %v1546, %v1545
    %v1558 = vpack.c.b16 %v1548, %v1547
    %v1559 = vpack.c.b16 %v1550, %v1549
    %v1560 = vpack.c.b16 %v1552, %v1551
    %1569 = vmatprep.subr.bf16.mxu0 0
    %1570 = vmatpush1.bf16.msra.mxu0 %v1553
    %1571 = vmatprep.subr.bf16.mxu0 0
    %1572 = vmatpush1.bf16.msra.mxu0 %v1554
    %1573 = vmatprep.subr.bf16.mxu0 0
    %1574 = vmatpush1.bf16.msra.mxu0 %v1555
    %1575 = vmatprep.subr.bf16.mxu0 0
    %1576 = vmatpush1.bf16.msra.mxu0 %v1556
    %1577 = vmatprep.subr.bf16.mxu0 0
    %1578 = vmatpush1.bf16.msra.mxu0 %v1557
    %1579 = vmatprep.subr.bf16.mxu0 0
    %1580 = vmatpush1.bf16.msra.mxu0 %v1558
    %1581 = vmatprep.subr.bf16.mxu0 0
    %1582 = vmatpush1.bf16.msra.mxu0 %v1559
    %1583 = vmatprep.subr.bf16.mxu0 0
    %1584 = vmatpush1.bf16.msra.mxu0 %v1560
    %1585 = vmatprep.subr.bf16.mxu0 0
    %1586 = vmatpush1.bf16.msra.mxu0 0
    %1587 = vmatprep.subr.bf16.mxu0 0
    %1588 = vmatpush1.bf16.msra.mxu0 0
    %1589 = vmatprep.subr.bf16.mxu0 0
    %1590 = vmatpush1.bf16.msra.mxu0 0
    %1591 = vmatprep.subr.bf16.mxu0 0
    %1592 = vmatpush1.bf16.msra.mxu0 0
    %1593 = vmatprep.subr.bf16.mxu0 0
    %1594 = vmatpush1.bf16.msra.mxu0 0
    %1595 = vmatprep.subr.bf16.mxu0 0
    %1596 = vmatpush1.bf16.msra.mxu0 0
    %1597 = vmatprep.subr.bf16.mxu0 0
    %1598 = vmatpush1.bf16.msra.mxu0 0
    %1599 = vmatprep.subr.bf16.mxu0 0
    %1600 = vmatpush1.bf16.msra.mxu0 0
    %1601 = vmatprep.mubr.bf16.mxu0 0
    %1602 = vmatmul.mubr.bf16.gmra.mrb[0].mxu0 %v1497
    %v1603 = vpop.f32.mrb[0].mxu0
    %v1604 = vadd.f32 %v1519, %v1603
    %v1605 = vpop.f32.mrb[0].mxu0
    %v1606 = vpop.f32.mrb[0].mxu0
    %v1607 = vpop.f32.mrb[0].mxu0
    %1608 = vdwg.mxu0
    %v1609 = vmax.f32 %v1604, 0.0
    %v1610 = vpack.c.bf16 %v1609, %v1609
    %v1611 = vld [vmem:[#allocation8] sm:$0xf]
    %v1612 = vld [vmem:[#allocation8 + $0x4] sm:$0xf]
    %v1613 = vld [vmem:[#allocation8 + $0x8] sm:$0xf]
    %v1614 = vld [vmem:[#allocation8 + $0xc] sm:$0xf]
    %v1615 = vld [vmem:[#allocation8 + $0x10] sm:$0xf]
    %v1616 = vld [vmem:[#allocation8 + $0x14] sm:$0xf]
    %v1617 = vld [vmem:[#allocation8 + $0x18] sm:$0xf]
    %v1618 = vld [vmem:[#allocation8 + $0x1c] sm:$0xf]
    %v1619 = vld [vmem:[#allocation8 + $0x20] sm:$0xf]
    %v1620 = vld [vmem:[#allocation8 + $0x24] sm:$0xf]
    %v1621 = vld [vmem:[#allocation8 + $0x28] sm:$0xf]
    %v1622 = vld [vmem:[#allocation8 + $0x2c] sm:$0xf]
    %v1623 = vld [vmem:[#allocation8 + $0x30] sm:$0xf]
    %v1624 = vld [vmem:[#allocation8 + $0x34] sm:$0xf]
    %v1625 = vld [vmem:[#allocation8 + $0x38] sm:$0xf]
    %v1626 = vld [vmem:[#allocation8 + $0x3c] sm:$0xf]
    %v1627 = vld [vmem:[%s6] sm:$0x1]
    %v1629 = vlaneseq
    %v1630 = vshrl.u32 %v1629, 7
    %v1631 = vsub.s32 0, %v1630
    %v1632 = vrot.slane %v1627, %v1631
    %v1650 = vunpack.c.l.b16 %v1611
    %v1651 = vunpack.c.l.b16 %v1612
    %v1652 = vunpack.c.l.b16 %v1613
    %v1653 = vunpack.c.l.b16 %v1614
    %v1654 = vunpack.c.l.b16 %v1615
    %v1655 = vunpack.c.l.b16 %v1616
    %v1656 = vunpack.c.l.b16 %v1617
    %v1657 = vunpack.c.l.b16 %v1618
    %v1658 = vunpack.c.l.b16 %v1619
    %v1659 = vunpack.c.l.b16 %v1620
    %v1660 = vunpack.c.l.b16 %v1621
    %v1661 = vunpack.c.l.b16 %v1622
    %v1662 = vunpack.c.l.b16 %v1623
    %v1663 = vunpack.c.l.b16 %v1624
    %v1664 = vunpack.c.l.b16 %v1625
    %v1665 = vunpack.c.l.b16 %v1626
    %v1666 = vpack.c.b16 %v1651, %v1650
    %v1667 = vpack.c.b16 %v1653, %v1652
    %v1668 = vpack.c.b16 %v1655, %v1654
    %v1669 = vpack.c.b16 %v1657, %v1656
    %v1670 = vpack.c.b16 %v1659, %v1658
    %v1671 = vpack.c.b16 %v1661, %v1660
    %v1672 = vpack.c.b16 %v1663, %v1662
    %v1673 = vpack.c.b16 %v1665, %v1664
    %1682 = vmatprep.subr.bf16.mxu0 0
    %1683 = vmatpush1.bf16.msra.mxu0 %v1666
    %1684 = vmatprep.subr.bf16.mxu0 0
    %1685 = vmatpush1.bf16.msra.mxu0 %v1667
    %1686 = vmatprep.subr.bf16.mxu0 0
    %1687 = vmatpush1.bf16.msra.mxu0 %v1668
    %1688 = vmatprep.subr.bf16.mxu0 0
    %1689 = vmatpush1.bf16.msra.mxu0 %v1669
    %1690 = vmatprep.subr.bf16.mxu0 0
    %1691 = vmatpush1.bf16.msra.mxu0 %v1670
    %1692 = vmatprep.subr.bf16.mxu0 0
    %1693 = vmatpush1.bf16.msra.mxu0 %v1671
    %1694 = vmatprep.subr.bf16.mxu0 0
    %1695 = vmatpush1.bf16.msra.mxu0 %v1672
    %1696 = vmatprep.subr.bf16.mxu0 0
    %1697 = vmatpush1.bf16.msra.mxu0 %v1673
    %1698 = vmatprep.subr.bf16.mxu0 0
    %1699 = vmatpush1.bf16.msra.mxu0 0
    %1700 = vmatprep.subr.bf16.mxu0 0
    %1701 = vmatpush1.bf16.msra.mxu0 0
    %1702 = vmatprep.subr.bf16.mxu0 0
    %1703 = vmatpush1.bf16.msra.mxu0 0
    %1704 = vmatprep.subr.bf16.mxu0 0
    %1705 = vmatpush1.bf16.msra.mxu0 0
    %1706 = vmatprep.subr.bf16.mxu0 0
    %1707 = vmatpush1.bf16.msra.mxu0 0
    %1708 = vmatprep.subr.bf16.mxu0 0
    %1709 = vmatpush1.bf16.msra.mxu0 0
    %1710 = vmatprep.subr.bf16.mxu0 0
    %1711 = vmatpush1.bf16.msra.mxu0 0
    %1712 = vmatprep.subr.bf16.mxu0 0
    %1713 = vmatpush1.bf16.msra.mxu0 0
    %1714 = vmatprep.mubr.bf16.mxu0 0
    %1715 = vmatmul.mubr.bf16.gmra.mrb[0].mxu0 %v1610
    %v1716 = vpop.f32.mrb[0].mxu0
    %v1717 = vadd.f32 %v1632, %v1716
    %v1718 = vpop.f32.mrb[0].mxu0
    %v1719 = vpop.f32.mrb[0].mxu0
    %v1720 = vpop.f32.mrb[0].mxu0
    %1721 = vdwg.mxu0
    %1722 = vst [vmem:[#allocation10] sm:$0xff] %v1717
    // Predicated region
    $region46: #{tpu_custom_call.1} parent=1 // pred_check
      _
    $region47: #{tpu_custom_call.1} parent=1 // pred_check_branch
      %1724 = sbr.rel (0) target = $region49
    $region48: #{tpu_custom_call.1} parent=1 // pred_region
      %s1726 = ssub.s32 128, 128
      %1727 = vsyncadd [#allocation4], %s1726
      %s1729 = sshll.u32 [#allocation10], 4
      %s1730 = int_to_ptr.vmem [resolvable:$true] %s1729
      %1732 = dma.vmem_to_hbm [thread:$0]  %s1730, 128, %s7, [#allocation4]
    $region49: #{tpu_custom_call.1} parent=1 // pred_fallthru
      _
    // Predicated region
    $region50: #{tpu_custom_call.1} parent=1 // pred_check
      _
    $region51: #{tpu_custom_call.1} parent=1 // pred_check_branch
      %1734 = sbr.rel (0) target = $region53
    $region52: #{tpu_custom_call.1} parent=1 // pred_region
      %1735 = dma.done [#allocation4], 128
    $region53: #{tpu_custom_call.1} parent=1 // pred_fallthru
      _
    %1736 = vsyncpa [#allocation3], 1
    %1737 = vsyncpa [#allocation6], 1
    %1738 = vsyncpa [#allocation9], 1
    %1739 = vsyncpa [#allocation4], 1

</llo_original>
